<compile_context>
chip_gen: v7x
topology: tpu7x:2x2x1
jax: 0.10.0
libtpu: 0.0.40
codegen_flags: <defaults>
</compile_context>

<pallas_src>
import functools

import jax
import jax.numpy as jnp
from jax.experimental import pallas as pl
from jax.experimental.pallas import tpu as pltpu

# ----- model hyper-parameters (Netz(in_chn=4, end_output=10, fc_layer=3)) ----
IN_CHN = 4
END_OUTPUT = 10
K = 5                       # conv kernel size
STRIDE = 4
IN_SPATIAL = 97             # implied by inodes = 6*12*12
CONV_OUT = 24               # (97 - 5) // 4 + 1
POOL_OUT = 12               # 24 // 2
P_PER_SAMPLE = POOL_OUT * POOL_OUT            # 144 pooled positions / sample
INODES = 6 * POOL_OUT * POOL_OUT              # 864, hard-coded in the module
HNODES = int(INODES / 4 * 2 ** 2 + INODES / -2 * 2 + (INODES / 4 + END_OUTPUT))  # 226

CKK = IN_CHN * K * K        # 100 im2col features
CKK_PAD = 128               # contraction padded to one full lane tile
OC_PAD = 8                  # conv out-channels padded 6 -> 8 (sublane tile)
HNODES_PAD = 256            # fc1 hidden padded 226 -> 256 (MXU-width multiple)
BATCH_TILE = 8              # samples / grid step -> 1152 = 9*128 lane columns


# --------------------------- fused Pallas kernel ------------------------------
def _netz_fused_kernel(p_ref, wc_ref, bc_ref, w1_ref, b1_ref, w2_ref, b2_ref,
                       o_ref, z_ref, flat_ref, *, tb):
    """One batch tile: conv(+bias, ReLU) -> 2x2 maxpool -> NCHW flatten ->
    ReLU(fc1) -> sigmoid(fc2), entirely in VMEM."""
    wc = wc_ref[...]                                    # (8, 128)
    bc = bc_ref[...]                                    # (8, 1)

    # conv + bias + ReLU for each of the 4 positions inside the 2x2 pool
    # window; lane-dense output (8, tb*144).  Elementwise max == max-pool.
    def conv_at(q):
        acc = jnp.dot(wc, p_ref[q], preferred_element_type=jnp.float32)
        return jnp.maximum(acc + bc, 0.0)

    z = conv_at(0)
    z = jnp.maximum(z, conv_at(1))
    z = jnp.maximum(z, conv_at(2))
    z = jnp.maximum(z, conv_at(3))                      # (8, tb*144)
    z_ref[...] = z

    # NCHW flatten (torch x.view(-1, 864)) as VMEM window copies:
    #   flat[b, c*144 + p] = pooled[c, b*144 + p]
    for b in range(tb):
        for c in range(6):
            flat_ref[b:b + 1, c * P_PER_SAMPLE:(c + 1) * P_PER_SAMPLE] = (
                z_ref[c:c + 1, b * P_PER_SAMPLE:(b + 1) * P_PER_SAMPLE])

    flat = flat_ref[...]                                # (tb, 864)
    h = jnp.dot(flat, w1_ref[...], preferred_element_type=jnp.float32)
    h = jnp.maximum(h + b1_ref[...], 0.0)               # ReLU(fc1), (tb, 256)
    logits = jnp.dot(h, w2_ref[...], preferred_element_type=jnp.float32)
    o_ref[...] = jax.nn.sigmoid(logits + b2_ref[...])   # sigmoid(fc2), (tb, 10)


# ------------------------------ host-side glue --------------------------------
def _im2col_pool_groups(x):
    """NCHW input -> (4, 128, B*144): pool-position group, zero-padded im2col
    feature (c*25 + kh*5 + kw), then batch-major pooled position b*144+i*12+j."""
    B, _, _, _ = x.shape
    span = STRIDE * CONV_OUT                            # 96
    cols = []
    for kh in range(K):
        for kw in range(K):
            cols.append(x[:, :, kh:kh + span:STRIDE, kw:kw + span:STRIDE])
    p = jnp.stack(cols, axis=2)                         # (B, C, 25, 24, 24)
    p = p.reshape(B, CKK, CONV_OUT, CONV_OUT)           # feature = c*25+kh*5+kw
    p = p.reshape(B, CKK, POOL_OUT, 2, POOL_OUT, 2)     # oh=2*ii+di, ow=2*jj+dj
    p = p.transpose(3, 5, 1, 0, 2, 4)                   # (di, dj, f, B, ii, jj)
    p = p.reshape(4, CKK, B * P_PER_SAMPLE)
    return jnp.pad(p, ((0, 0), (0, CKK_PAD - CKK), (0, 0)))


def pack_params(params):
    """One-time re-layout of torch-style parameters into kernel layout."""
    conv_w, conv_b, fc1_w, fc1_b, fc2_w, fc2_b = params
    f32 = jnp.float32
    wc = jnp.zeros((OC_PAD, CKK_PAD), f32).at[:6, :CKK].set(
        conv_w.reshape(6, CKK).astype(f32))
    bc = jnp.zeros((OC_PAD, 1), f32).at[:6, 0].set(conv_b.astype(f32))
    w1 = jnp.zeros((INODES, HNODES_PAD), f32).at[:, :HNODES].set(
        fc1_w.T.astype(f32))
    b1 = jnp.zeros((1, HNODES_PAD), f32).at[0, :HNODES].set(fc1_b.astype(f32))
    w2 = jnp.zeros((HNODES_PAD, END_OUTPUT), f32).at[:HNODES, :].set(
        fc2_w.T.astype(f32))
    b2 = fc2_b.reshape(1, END_OUTPUT).astype(f32)
    return wc, bc, w1, b1, w2, b2


@jax.jit
def netz_forward(x, packed_params):
    """Pallas implementation of Netz.forward (fc_layer == 3, eval semantics)."""
    wc, bc, w1, b1, w2, b2 = packed_params
    B = x.shape[0]

    # Batch tiling: tiles of 8 keep lane/sublane tiles aligned (1152 = 9*128).
    if B % BATCH_TILE == 0:
        tb = BATCH_TILE
    elif B < BATCH_TILE:
        tb = B                                          # single grid step
    else:
        tb = BATCH_TILE
        x = jnp.pad(x, ((0, (-B) % BATCH_TILE), (0, 0), (0, 0), (0, 0)))
    bp = x.shape[0]
    pt = tb * P_PER_SAMPLE

    # TODO(synk): im2col (~2x expansion) still runs as XLA ops through HBM; a
    # further step would stream raw (tb, C, 97, 97) blocks and build patches
    # in-kernel with strided loads.
    patches = _im2col_pool_groups(x)                    # (4, 128, bp*144)

    out = pl.pallas_call(
        functools.partial(_netz_fused_kernel, tb=tb),
        out_shape=jax.ShapeDtypeStruct((bp, END_OUTPUT), jnp.float32),
        grid=(bp // tb,),
        in_specs=[
            pl.BlockSpec((4, CKK_PAD, pt), lambda i: (0, 0, i)),
            pl.BlockSpec((OC_PAD, CKK_PAD), lambda i: (0, 0)),
            pl.BlockSpec((OC_PAD, 1), lambda i: (0, 0)),
            pl.BlockSpec((INODES, HNODES_PAD), lambda i: (0, 0)),
            pl.BlockSpec((1, HNODES_PAD), lambda i: (0, 0)),
            pl.BlockSpec((HNODES_PAD, END_OUTPUT), lambda i: (0, 0)),
            pl.BlockSpec((1, END_OUTPUT), lambda i: (0, 0)),
        ],
        out_specs=pl.BlockSpec((tb, END_OUTPUT), lambda i: (i, 0)),
        scratch_shapes=[
            pltpu.VMEM((OC_PAD, pt), jnp.float32),      # pooled conv activations
            pltpu.VMEM((tb, INODES), jnp.float32),      # NCHW-flattened features
        ],
        compiler_params=pltpu.CompilerParams(
            dimension_semantics=("parallel",)),
    )(patches, wc, bc, w1, b1, w2, b2)

    # TODO(synk): nn.Dropout2d(p=0.2) treated as identity (inference semantics).
    return out[:B]


# ------------------------- params / pure-JAX reference ------------------------
def init_params(key):
    """Deterministic PyTorch-default-style init (uniform +/- 1/sqrt(fan_in))."""
    ks = jax.random.split(key, 6)

    def u(k, shape, fan_in):
        bound = 1.0 / jnp.sqrt(jnp.float32(fan_in))
        return jax.random.uniform(k, shape, jnp.float32, -bound, bound)

    conv_w = u(ks[0], (6, IN_CHN, K, K), IN_CHN * K * K)
    conv_b = u(ks[1], (6,), IN_CHN * K * K)
    fc1_w = u(ks[2], (HNODES, INODES), INODES)          # torch Linear: (out, in)
    fc1_b = u(ks[3], (HNODES,), INODES)
    fc2_w = u(ks[4], (END_OUTPUT, HNODES), HNODES)
    fc2_b = u(ks[5], (END_OUTPUT,), HNODES)
    return conv_w, conv_b, fc1_w, fc1_b, fc2_w, fc2_b


def netz_reference(x, params):
    conv_w, conv_b, fc1_w, fc1_b, fc2_w, fc2_b = params
    y = jax.lax.conv_general_dilated(
        x, conv_w, (STRIDE, STRIDE), 'VALID',
        dimension_numbers=('NCHW', 'OIHW', 'NCHW'))
    y = jnp.maximum(y + conv_b.reshape(1, 6, 1, 1), 0.0)
    y = jax.lax.reduce_window(y, -jnp.inf, jax.lax.max,
                              (1, 1, 2, 2), (1, 1, 2, 2), 'VALID')
    flat = y.reshape(x.shape[0], -1)
    h = jnp.maximum(flat @ fc1_w.T + fc1_b, 0.0)
    return jax.nn.sigmoid(h @ fc2_w.T + fc2_b)


# ------------------------------------ main ------------------------------------
if __name__ == "__main__":
    key = jax.random.PRNGKey(0)
    kx, kp = jax.random.split(key)
    x = jax.random.normal(kx, (2, IN_CHN, IN_SPATIAL, IN_SPATIAL), jnp.float32)
    params = init_params(kp)
    packed = pack_params(params)

    out = jax.block_until_ready(netz_forward(x, packed))
    ref = jax.block_until_ready(netz_reference(x, params))

    assert out.shape == (2, END_OUTPUT), out.shape
    assert jnp.allclose(out, ref, atol=5e-3, rtol=5e-3), (
        float(jnp.max(jnp.abs(out - ref))))

    print("KERNEL_OK")
</pallas_src>

<mosaic_0001>
module attributes {stable_mosaic.version = 11 : i64} {
  func.func @_netz_fused_kernel(%arg0: i32, %arg1: memref<4x128x288xf32, #tpu.memory_space<vmem>>, %arg2: memref<8x128xf32, #tpu.memory_space<vmem>>, %arg3: memref<8x1xf32, #tpu.memory_space<vmem>>, %arg4: memref<864x256xf32, #tpu.memory_space<vmem>>, %arg5: memref<1x256xf32, #tpu.memory_space<vmem>>, %arg6: memref<256x10xf32, #tpu.memory_space<vmem>>, %arg7: memref<1x10xf32, #tpu.memory_space<vmem>>, %arg8: memref<2x10xf32, #tpu.memory_space<vmem>>, %arg9: memref<8x288xf32, #tpu.memory_space<vmem>>, %arg10: memref<2x864xf32, #tpu.memory_space<vmem>>) attributes {dimension_semantics = [#tpu.dimension_semantics<parallel>], iteration_bounds = array<i64: 1>, scalar_prefetch = 0 : i64, scratch_operands = 2 : i64, tpu.core_type = #tpu.core_type<tc>, window_params = [{transform_indices = @transform_0, window_bounds = array<i64: 4, 128, 288>}, {pipeline_mode = #tpu.pipeline_mode<synchronous>, transform_indices = @transform_1, window_bounds = array<i64: 8, 128>}, {pipeline_mode = #tpu.pipeline_mode<synchronous>, transform_indices = @transform_2, window_bounds = array<i64: 8, 1>}, {pipeline_mode = #tpu.pipeline_mode<synchronous>, transform_indices = @transform_3, window_bounds = array<i64: 864, 256>}, {pipeline_mode = #tpu.pipeline_mode<synchronous>, transform_indices = @transform_4, window_bounds = array<i64: 1, 256>}, {pipeline_mode = #tpu.pipeline_mode<synchronous>, transform_indices = @transform_5, window_bounds = array<i64: 256, 10>}, {pipeline_mode = #tpu.pipeline_mode<synchronous>, transform_indices = @transform_6, window_bounds = array<i64: 1, 10>}, {transform_indices = @transform_7, window_bounds = array<i64: 2, 10>}]} {
    %c0 = arith.constant 0 : index
    %c0_0 = arith.constant 0 : index
    %0 = vector.load %arg2[%c0, %c0_0] : memref<8x128xf32, #tpu.memory_space<vmem>>, vector<8x128xf32>
    %c0_1 = arith.constant 0 : index
    %c0_2 = arith.constant 0 : index
    %1 = vector.load %arg3[%c0_1, %c0_2] : memref<8x1xf32, #tpu.memory_space<vmem>>, vector<8x1xf32>
    %c0_3 = arith.constant 0 : index
    %c0_4 = arith.constant 0 : index
    %c0_5 = arith.constant 0 : index
    %2 = vector.load %arg1[%c0_3, %c0_4, %c0_5] : memref<4x128x288xf32, #tpu.memory_space<vmem>>, vector<1x128x288xf32>
    %3 = vector.shape_cast %2 : vector<1x128x288xf32> to vector<128x288xf32>
    %cst = arith.constant dense<0.000000e+00> : vector<8x288xf32>
    %4 = tpu.matmul %0, %3, %cst {dimension_numbers = #tpu.dot_dimension_numbers<[1], [0], [0], [1], [0, 0, 1, 1], [], []>} : vector<8x128xf32>, vector<128x288xf32>, vector<8x288xf32> -> vector<8x288xf32>
    %5 = vector.broadcast %1 : vector<8x1xf32> to vector<8x288xf32>
    %6 = arith.addf %4, %5 : vector<8x288xf32>
    %cst_6 = arith.constant 0.000000e+00 : f32
    %7 = vector.broadcast %cst_6 : f32 to vector<8x288xf32>
    %8 = arith.maximumf %6, %7 : vector<8x288xf32>
    %c1 = arith.constant 1 : index
    %c0_7 = arith.constant 0 : index
    %c0_8 = arith.constant 0 : index
    %9 = vector.load %arg1[%c1, %c0_7, %c0_8] : memref<4x128x288xf32, #tpu.memory_space<vmem>>, vector<1x128x288xf32>
    %10 = vector.shape_cast %9 : vector<1x128x288xf32> to vector<128x288xf32>
    %cst_9 = arith.constant dense<0.000000e+00> : vector<8x288xf32>
    %11 = tpu.matmul %0, %10, %cst_9 {dimension_numbers = #tpu.dot_dimension_numbers<[1], [0], [0], [1], [0, 0, 1, 1], [], []>} : vector<8x128xf32>, vector<128x288xf32>, vector<8x288xf32> -> vector<8x288xf32>
    %12 = vector.broadcast %1 : vector<8x1xf32> to vector<8x288xf32>
    %13 = arith.addf %11, %12 : vector<8x288xf32>
    %cst_10 = arith.constant 0.000000e+00 : f32
    %14 = vector.broadcast %cst_10 : f32 to vector<8x288xf32>
    %15 = arith.maximumf %13, %14 : vector<8x288xf32>
    %16 = arith.maximumf %8, %15 : vector<8x288xf32>
    %c2 = arith.constant 2 : index
    %c0_11 = arith.constant 0 : index
    %c0_12 = arith.constant 0 : index
    %17 = vector.load %arg1[%c2, %c0_11, %c0_12] : memref<4x128x288xf32, #tpu.memory_space<vmem>>, vector<1x128x288xf32>
    %18 = vector.shape_cast %17 : vector<1x128x288xf32> to vector<128x288xf32>
    %cst_13 = arith.constant dense<0.000000e+00> : vector<8x288xf32>
    %19 = tpu.matmul %0, %18, %cst_13 {dimension_numbers = #tpu.dot_dimension_numbers<[1], [0], [0], [1], [0, 0, 1, 1], [], []>} : vector<8x128xf32>, vector<128x288xf32>, vector<8x288xf32> -> vector<8x288xf32>
    %20 = vector.broadcast %1 : vector<8x1xf32> to vector<8x288xf32>
    %21 = arith.addf %19, %20 : vector<8x288xf32>
    %cst_14 = arith.constant 0.000000e+00 : f32
    %22 = vector.broadcast %cst_14 : f32 to vector<8x288xf32>
    %23 = arith.maximumf %21, %22 : vector<8x288xf32>
    %24 = arith.maximumf %16, %23 : vector<8x288xf32>
    %c3 = arith.constant 3 : index
    %c0_15 = arith.constant 0 : index
    %c0_16 = arith.constant 0 : index
    %25 = vector.load %arg1[%c3, %c0_15, %c0_16] : memref<4x128x288xf32, #tpu.memory_space<vmem>>, vector<1x128x288xf32>
    %26 = vector.shape_cast %25 : vector<1x128x288xf32> to vector<128x288xf32>
    %cst_17 = arith.constant dense<0.000000e+00> : vector<8x288xf32>
    %27 = tpu.matmul %0, %26, %cst_17 {dimension_numbers = #tpu.dot_dimension_numbers<[1], [0], [0], [1], [0, 0, 1, 1], [], []>} : vector<8x128xf32>, vector<128x288xf32>, vector<8x288xf32> -> vector<8x288xf32>
    %28 = vector.broadcast %1 : vector<8x1xf32> to vector<8x288xf32>
    %29 = arith.addf %27, %28 : vector<8x288xf32>
    %cst_18 = arith.constant 0.000000e+00 : f32
    %30 = vector.broadcast %cst_18 : f32 to vector<8x288xf32>
    %31 = arith.maximumf %29, %30 : vector<8x288xf32>
    %32 = arith.maximumf %24, %31 : vector<8x288xf32>
    %c0_19 = arith.constant 0 : index
    %c0_20 = arith.constant 0 : index
    %33 = vector.load %arg9[%c0_19, %c0_20] : memref<8x288xf32, #tpu.memory_space<vmem>>, vector<8x288xf32>
    tpu.vector_store %arg9[%c0_19, %c0_20], %32 {strides = array<i32>} : memref<8x288xf32, #tpu.memory_space<vmem>>, vector<8x288xf32>,
    %c0_21 = arith.constant 0 : index
    %c0_22 = arith.constant 0 : index
    %34 = vector.load %arg9[%c0_21, %c0_22] : memref<8x288xf32, #tpu.memory_space<vmem>>, vector<1x144xf32>
    %c0_23 = arith.constant 0 : index
    %c0_24 = arith.constant 0 : index
    %35 = vector.load %arg10[%c0_23, %c0_24] : memref<2x864xf32, #tpu.memory_space<vmem>>, vector<1x144xf32>
    tpu.vector_store %arg10[%c0_23, %c0_24], %34 {strides = array<i32>} : memref<2x864xf32, #tpu.memory_space<vmem>>, vector<1x144xf32>,
    %c1_25 = arith.constant 1 : index
    %c0_26 = arith.constant 0 : index
    %36 = vector.load %arg9[%c1_25, %c0_26] : memref<8x288xf32, #tpu.memory_space<vmem>>, vector<1x144xf32>
    %c0_27 = arith.constant 0 : index
    %c144 = arith.constant 144 : index
    %37 = vector.load %arg10[%c0_27, %c144] : memref<2x864xf32, #tpu.memory_space<vmem>>, vector<1x144xf32>
    tpu.vector_store %arg10[%c0_27, %c144], %36 {strides = array<i32>} : memref<2x864xf32, #tpu.memory_space<vmem>>, vector<1x144xf32>,
    %c2_28 = arith.constant 2 : index
    %c0_29 = arith.constant 0 : index
    %38 = vector.load %arg9[%c2_28, %c0_29] : memref<8x288xf32, #tpu.memory_space<vmem>>, vector<1x144xf32>
    %c0_30 = arith.constant 0 : index
    %c288 = arith.constant 288 : index
    %39 = vector.load %arg10[%c0_30, %c288] : memref<2x864xf32, #tpu.memory_space<vmem>>, vector<1x144xf32>
    tpu.vector_store %arg10[%c0_30, %c288], %38 {strides = array<i32>} : memref<2x864xf32, #tpu.memory_space<vmem>>, vector<1x144xf32>,
    %c3_31 = arith.constant 3 : index
    %c0_32 = arith.constant 0 : index
    %40 = vector.load %arg9[%c3_31, %c0_32] : memref<8x288xf32, #tpu.memory_space<vmem>>, vector<1x144xf32>
    %c0_33 = arith.constant 0 : index
    %c432 = arith.constant 432 : index
    %41 = vector.load %arg10[%c0_33, %c432] : memref<2x864xf32, #tpu.memory_space<vmem>>, vector<1x144xf32>
    tpu.vector_store %arg10[%c0_33, %c432], %40 {strides = array<i32>} : memref<2x864xf32, #tpu.memory_space<vmem>>, vector<1x144xf32>,
    %c4 = arith.constant 4 : index
    %c0_34 = arith.constant 0 : index
    %42 = vector.load %arg9[%c4, %c0_34] : memref<8x288xf32, #tpu.memory_space<vmem>>, vector<1x144xf32>
    %c0_35 = arith.constant 0 : index
    %c576 = arith.constant 576 : index
    %43 = vector.load %arg10[%c0_35, %c576] : memref<2x864xf32, #tpu.memory_space<vmem>>, vector<1x144xf32>
    tpu.vector_store %arg10[%c0_35, %c576], %42 {strides = array<i32>} : memref<2x864xf32, #tpu.memory_space<vmem>>, vector<1x144xf32>,
    %c5 = arith.constant 5 : index
    %c0_36 = arith.constant 0 : index
    %44 = vector.load %arg9[%c5, %c0_36] : memref<8x288xf32, #tpu.memory_space<vmem>>, vector<1x144xf32>
    %c0_37 = arith.constant 0 : index
    %c720 = arith.constant 720 : index
    %45 = vector.load %arg10[%c0_37, %c720] : memref<2x864xf32, #tpu.memory_space<vmem>>, vector<1x144xf32>
    tpu.vector_store %arg10[%c0_37, %c720], %44 {strides = array<i32>} : memref<2x864xf32, #tpu.memory_space<vmem>>, vector<1x144xf32>,
    %c0_38 = arith.constant 0 : index
    %c144_39 = arith.constant 144 : index
    %46 = vector.load %arg9[%c0_38, %c144_39] : memref<8x288xf32, #tpu.memory_space<vmem>>, vector<1x144xf32>
    %c1_40 = arith.constant 1 : index
    %c0_41 = arith.constant 0 : index
    %47 = vector.load %arg10[%c1_40, %c0_41] : memref<2x864xf32, #tpu.memory_space<vmem>>, vector<1x144xf32>
    tpu.vector_store %arg10[%c1_40, %c0_41], %46 {strides = array<i32>} : memref<2x864xf32, #tpu.memory_space<vmem>>, vector<1x144xf32>,
    %c1_42 = arith.constant 1 : index
    %c144_43 = arith.constant 144 : index
    %48 = vector.load %arg9[%c1_42, %c144_43] : memref<8x288xf32, #tpu.memory_space<vmem>>, vector<1x144xf32>
    %c1_44 = arith.constant 1 : index
    %c144_45 = arith.constant 144 : index
    %49 = vector.load %arg10[%c1_44, %c144_45] : memref<2x864xf32, #tpu.memory_space<vmem>>, vector<1x144xf32>
    tpu.vector_store %arg10[%c1_44, %c144_45], %48 {strides = array<i32>} : memref<2x864xf32, #tpu.memory_space<vmem>>, vector<1x144xf32>,
    %c2_46 = arith.constant 2 : index
    %c144_47 = arith.constant 144 : index
    %50 = vector.load %arg9[%c2_46, %c144_47] : memref<8x288xf32, #tpu.memory_space<vmem>>, vector<1x144xf32>
    %c1_48 = arith.constant 1 : index
    %c288_49 = arith.constant 288 : index
    %51 = vector.load %arg10[%c1_48, %c288_49] : memref<2x864xf32, #tpu.memory_space<vmem>>, vector<1x144xf32>
    tpu.vector_store %arg10[%c1_48, %c288_49], %50 {strides = array<i32>} : memref<2x864xf32, #tpu.memory_space<vmem>>, vector<1x144xf32>,
    %c3_50 = arith.constant 3 : index
    %c144_51 = arith.constant 144 : index
    %52 = vector.load %arg9[%c3_50, %c144_51] : memref<8x288xf32, #tpu.memory_space<vmem>>, vector<1x144xf32>
    %c1_52 = arith.constant 1 : index
    %c432_53 = arith.constant 432 : index
    %53 = vector.load %arg10[%c1_52, %c432_53] : memref<2x864xf32, #tpu.memory_space<vmem>>, vector<1x144xf32>
    tpu.vector_store %arg10[%c1_52, %c432_53], %52 {strides = array<i32>} : memref<2x864xf32, #tpu.memory_space<vmem>>, vector<1x144xf32>,
    %c4_54 = arith.constant 4 : index
    %c144_55 = arith.constant 144 : index
    %54 = vector.load %arg9[%c4_54, %c144_55] : memref<8x288xf32, #tpu.memory_space<vmem>>, vector<1x144xf32>
    %c1_56 = arith.constant 1 : index
    %c576_57 = arith.constant 576 : index
    %55 = vector.load %arg10[%c1_56, %c576_57] : memref<2x864xf32, #tpu.memory_space<vmem>>, vector<1x144xf32>
    tpu.vector_store %arg10[%c1_56, %c576_57], %54 {strides = array<i32>} : memref<2x864xf32, #tpu.memory_space<vmem>>, vector<1x144xf32>,
    %c5_58 = arith.constant 5 : index
    %c144_59 = arith.constant 144 : index
    %56 = vector.load %arg9[%c5_58, %c144_59] : memref<8x288xf32, #tpu.memory_space<vmem>>, vector<1x144xf32>
    %c1_60 = arith.constant 1 : index
    %c720_61 = arith.constant 720 : index
    %57 = vector.load %arg10[%c1_60, %c720_61] : memref<2x864xf32, #tpu.memory_space<vmem>>, vector<1x144xf32>
    tpu.vector_store %arg10[%c1_60, %c720_61], %56 {strides = array<i32>} : memref<2x864xf32, #tpu.memory_space<vmem>>, vector<1x144xf32>,
    %c0_62 = arith.constant 0 : index
    %c0_63 = arith.constant 0 : index
    %58 = vector.load %arg10[%c0_62, %c0_63] : memref<2x864xf32, #tpu.memory_space<vmem>>, vector<2x864xf32>
    %c0_64 = arith.constant 0 : index
    %c0_65 = arith.constant 0 : index
    %59 = vector.load %arg4[%c0_64, %c0_65] : memref<864x256xf32, #tpu.memory_space<vmem>>, vector<864x256xf32>
    %cst_66 = arith.constant dense<0.000000e+00> : vector<2x256xf32>
    %60 = tpu.matmul %58, %59, %cst_66 {dimension_numbers = #tpu.dot_dimension_numbers<[1], [0], [0], [1], [0, 0, 1, 1], [], []>} : vector<2x864xf32>, vector<864x256xf32>, vector<2x256xf32> -> vector<2x256xf32>
    %c0_67 = arith.constant 0 : index
    %c0_68 = arith.constant 0 : index
    %61 = vector.load %arg5[%c0_67, %c0_68] : memref<1x256xf32, #tpu.memory_space<vmem>>, vector<1x256xf32>
    %62 = vector.broadcast %61 : vector<1x256xf32> to vector<2x256xf32>
    %63 = arith.addf %60, %62 : vector<2x256xf32>
    %cst_69 = arith.constant 0.000000e+00 : f32
    %64 = vector.broadcast %cst_69 : f32 to vector<2x256xf32>
    %65 = arith.maximumf %63, %64 : vector<2x256xf32>
    %c0_70 = arith.constant 0 : index
    %c0_71 = arith.constant 0 : index
    %66 = vector.load %arg6[%c0_70, %c0_71] : memref<256x10xf32, #tpu.memory_space<vmem>>, vector<256x10xf32>
    %cst_72 = arith.constant dense<0.000000e+00> : vector<2x10xf32>
    %67 = tpu.matmul %65, %66, %cst_72 {dimension_numbers = #tpu.dot_dimension_numbers<[1], [0], [0], [1], [0, 0, 1, 1], [], []>} : vector<2x256xf32>, vector<256x10xf32>, vector<2x10xf32> -> vector<2x10xf32>
    %c0_73 = arith.constant 0 : index
    %c0_74 = arith.constant 0 : index
    %68 = vector.load %arg7[%c0_73, %c0_74] : memref<1x10xf32, #tpu.memory_space<vmem>>, vector<1x10xf32>
    %69 = vector.broadcast %68 : vector<1x10xf32> to vector<2x10xf32>
    %70 = arith.addf %67, %69 : vector<2x10xf32>
    %71 = arith.negf %70 : vector<2x10xf32>
    %72 = math.exp %71 : vector<2x10xf32>
    %cst_75 = arith.constant 1.000000e+00 : f32
    %73 = vector.broadcast %cst_75 : f32 to vector<2x10xf32>
    %74 = arith.addf %73, %72 : vector<2x10xf32>
    %75 = arith.divf %73, %74 : vector<2x10xf32>
    %c0_76 = arith.constant 0 : index
    %c0_77 = arith.constant 0 : index
    %76 = vector.load %arg8[%c0_76, %c0_77] : memref<2x10xf32, #tpu.memory_space<vmem>>, vector<2x10xf32>
    tpu.vector_store %arg8[%c0_76, %c0_77], %75 {strides = array<i32>} : memref<2x10xf32, #tpu.memory_space<vmem>>, vector<2x10xf32>,
    return
  }
  func.func @transform_0(%arg0: i32) -> (i32, i32, i32) {
    %c0_i32 = arith.constant 0 : i32
    %c0_i32_0 = arith.constant 0 : i32
    %c0_i32_1 = arith.constant 0 : i32
    return %c0_i32, %c0_i32_0, %arg0 : i32, i32, i32
  }
  func.func @transform_1(%arg0: i32) -> (i32, i32) {
    %c0_i32 = arith.constant 0 : i32
    %c0_i32_0 = arith.constant 0 : i32
    %c0_i32_1 = arith.constant 0 : i32
    return %c0_i32, %c0_i32_0 : i32, i32
  }
  func.func @transform_2(%arg0: i32) -> (i32, i32) {
    %c0_i32 = arith.constant 0 : i32
    %c0_i32_0 = arith.constant 0 : i32
    %c0_i32_1 = arith.constant 0 : i32
    return %c0_i32, %c0_i32_0 : i32, i32
  }
  func.func @transform_3(%arg0: i32) -> (i32, i32) {
    %c0_i32 = arith.constant 0 : i32
    %c0_i32_0 = arith.constant 0 : i32
    %c0_i32_1 = arith.constant 0 : i32
    return %c0_i32, %c0_i32_0 : i32, i32
  }
  func.func @transform_4(%arg0: i32) -> (i32, i32) {
    %c0_i32 = arith.constant 0 : i32
    %c0_i32_0 = arith.constant 0 : i32
    %c0_i32_1 = arith.constant 0 : i32
    return %c0_i32, %c0_i32_0 : i32, i32
  }
  func.func @transform_5(%arg0: i32) -> (i32, i32) {
    %c0_i32 = arith.constant 0 : i32
    %c0_i32_0 = arith.constant 0 : i32
    %c0_i32_1 = arith.constant 0 : i32
    return %c0_i32, %c0_i32_0 : i32, i32
  }
  func.func @transform_6(%arg0: i32) -> (i32, i32) {
    %c0_i32 = arith.constant 0 : i32
    %c0_i32_0 = arith.constant 0 : i32
    %c0_i32_1 = arith.constant 0 : i32
    return %c0_i32, %c0_i32_0 : i32, i32
  }
  func.func @transform_7(%arg0: i32) -> (i32, i32) {
    %c0_i32 = arith.constant 0 : i32
    %c0_i32_0 = arith.constant 0 : i32
    return %arg0, %c0_i32 : i32, i32
  }
}

</mosaic_0001>

<llo_original>
// kernel: netz_forward.1
$region0: #{netz_forward.1}
  #allocation0 [shape = 'u32[]', space=smem, size = 0x4, offset = 0x4, fixed_abs, tag = 'smem constant byte address 0x4 - core index']
  #allocation1 [shape = 'u32[144,128]{1,0:T(1,128)}', space=vmem, size = 0x12000, scoped, tag = 'internal scratch']
  #allocation2 [shape = 'f32[8,288]{1,0:T(8,128)}', space=vmem, size = 0x3000, scoped, tag = 'scratch operand']
  #allocation3 [shape = 'f32[2,864]{1,0:T(2,128)}', space=vmem, size = 0x1c00, scoped, tag = 'scratch operand']
  %s0 = inlined_call_operand.vmem [shape: f32[4,128,288], index: 0, kind: input, shape index: {}]
  %s1 = inlined_call_operand.vmem [shape: f32[8,128], index: 1, kind: input, shape index: {}]
  %s2 = inlined_call_operand.vmem [shape: f32[8,1], index: 2, kind: input, shape index: {}]
  %s3 = inlined_call_operand.vmem [shape: f32[864,256], index: 3, kind: input, shape index: {}]
  %s4 = inlined_call_operand.vmem [shape: f32[1,256], index: 4, kind: input, shape index: {}]
  %s5 = inlined_call_operand.vmem [shape: f32[256,10], index: 5, kind: input, shape index: {}]
  %s6 = inlined_call_operand.vmem [shape: f32[1,10], index: 6, kind: input, shape index: {}]
  %s7 = inlined_call_operand.hbm [shape: f32[2,10], index: 7, kind: output, shape index: {}]
  %s8 = sld [smem:[#allocation0]]
  $region38: #{netz_forward.1} parent=0
    _
  %s10 = ssub.s32 1, %s8
  %s11 = scalar_select 0, %s10, %s8
  $region1: #{netz_forward.1} parent=0
    #allocation4 [shape = 'u8[1024]{0}', space=vmem, size = 0x400, scoped, tag = 'output window, operand 0, single buffered']
    #allocation5 [shape = 's32[1]{0}', space=sflag, size = 0x4, scoped, tag = 'scoped memory for netz_forward.1']
    %12 = vsyncpa [#allocation5], 0
    // Predicated region
    $region2: #{netz_forward.1} parent=1 // pred_check
      _
    $region3: #{netz_forward.1} parent=1 // pred_check_branch
      %14 = sbr.rel (0) target = $region5
    $region4: #{netz_forward.1} parent=1 // pred_region
      _
    $region5: #{netz_forward.1} parent=1 // pred_fallthru
      _
    // Predicated region
    $region6: #{netz_forward.1} parent=1 // pred_check
      _
    $region7: #{netz_forward.1} parent=1 // pred_check_branch
      %16 = sbr.rel (0) target = $region9
    $region8: #{netz_forward.1} parent=1 // pred_region
      _
    $region9: #{netz_forward.1} parent=1 // pred_fallthru
      _
    // Predicated region
    $region10: #{netz_forward.1} parent=1 // pred_check
      _
    $region11: #{netz_forward.1} parent=1 // pred_check_branch
      %18 = sbr.rel (0) target = $region13
    $region12: #{netz_forward.1} parent=1 // pred_region
      _
    $region13: #{netz_forward.1} parent=1 // pred_fallthru
      _
    // Predicated region
    $region14: #{netz_forward.1} parent=1 // pred_check
      _
    $region15: #{netz_forward.1} parent=1 // pred_check_branch
      %20 = sbr.rel (0) target = $region17
    $region16: #{netz_forward.1} parent=1 // pred_region
      _
    $region17: #{netz_forward.1} parent=1 // pred_fallthru
      _
    // Predicated region
    $region18: #{netz_forward.1} parent=1 // pred_check
      _
    $region19: #{netz_forward.1} parent=1 // pred_check_branch
      %22 = sbr.rel (0) target = $region21
    $region20: #{netz_forward.1} parent=1 // pred_region
      _
    $region21: #{netz_forward.1} parent=1 // pred_fallthru
      _
    // Predicated region
    $region22: #{netz_forward.1} parent=1 // pred_check
      _
    $region23: #{netz_forward.1} parent=1 // pred_check_branch
      %24 = sbr.rel (0) target = $region25
    $region24: #{netz_forward.1} parent=1 // pred_region
      _
    $region25: #{netz_forward.1} parent=1 // pred_fallthru
      _
    // Predicated region
    $region26: #{netz_forward.1} parent=1 // pred_check
      _
    $region27: #{netz_forward.1} parent=1 // pred_check_branch
      %26 = sbr.rel (0) target = $region29
    $region28: #{netz_forward.1} parent=1 // pred_region
      _
    $region29: #{netz_forward.1} parent=1 // pred_fallthru
      _
    %v27 = vld [vmem:[%s1] sm:$0xff]
    %v28 = vld [vmem:[%s2] sm:$0xff]
    %v29 = vld [vmem:[%s0] sm:$0xff]
    %v30 = vld [vmem:[%s0 + $0x8] sm:$0xff]
    %v31 = vld [vmem:[%s0 + $0x10] sm:$0xff]
    %v32 = vld [vmem:[%s0 + $0x18] sm:$0xff]
    %v33 = vld [vmem:[%s0 + $0x20] sm:$0xff]
    %v34 = vld [vmem:[%s0 + $0x28] sm:$0xff]
    %v35 = vld [vmem:[%s0 + $0x30] sm:$0xff]
    %v36 = vld [vmem:[%s0 + $0x38] sm:$0xff]
    %v37 = vld [vmem:[%s0 + $0x40] sm:$0xff]
    %v38 = vld [vmem:[%s0 + $0x48] sm:$0xff]
    %v39 = vld [vmem:[%s0 + $0x50] sm:$0xff]
    %v40 = vld [vmem:[%s0 + $0x58] sm:$0xff]
    %v41 = vld [vmem:[%s0 + $0x60] sm:$0xff]
    %v42 = vld [vmem:[%s0 + $0x68] sm:$0xff]
    %v43 = vld [vmem:[%s0 + $0x70] sm:$0xff]
    %v44 = vld [vmem:[%s0 + $0x78] sm:$0xff]
    %v45 = vld [vmem:[%s0 + $0x80] sm:$0xff]
    %v46 = vld [vmem:[%s0 + $0x88] sm:$0xff]
    %v47 = vld [vmem:[%s0 + $0x90] sm:$0xff]
    %v48 = vld [vmem:[%s0 + $0x98] sm:$0xff]
    %v49 = vld [vmem:[%s0 + $0xa0] sm:$0xff]
    %v50 = vld [vmem:[%s0 + $0xa8] sm:$0xff]
    %v51 = vld [vmem:[%s0 + $0xb0] sm:$0xff]
    %v52 = vld [vmem:[%s0 + $0xb8] sm:$0xff]
    %v53 = vld [vmem:[%s0 + $0xc0] sm:$0xff]
    %v54 = vld [vmem:[%s0 + $0xc8] sm:$0xff]
    %v55 = vld [vmem:[%s0 + $0xd0] sm:$0xff]
    %v56 = vld [vmem:[%s0 + $0xd8] sm:$0xff]
    %v57 = vld [vmem:[%s0 + $0xe0] sm:$0xff]
    %v58 = vld [vmem:[%s0 + $0xe8] sm:$0xff]
    %v59 = vld [vmem:[%s0 + $0xf0] sm:$0xff]
    %v60 = vld [vmem:[%s0 + $0xf8] sm:$0xff]
    %v61 = vld [vmem:[%s0 + $0x100] sm:$0xff]
    %v62 = vld [vmem:[%s0 + $0x108] sm:$0xff]
    %v63 = vld [vmem:[%s0 + $0x110] sm:$0xff]
    %v64 = vld [vmem:[%s0 + $0x118] sm:$0xff]
    %v65 = vld [vmem:[%s0 + $0x120] sm:$0xff]
    %v66 = vld [vmem:[%s0 + $0x128] sm:$0xff]
    %v67 = vld [vmem:[%s0 + $0x130] sm:$0xff]
    %v68 = vld [vmem:[%s0 + $0x138] sm:$0xff]
    %v69 = vld [vmem:[%s0 + $0x140] sm:$0xff]
    %v70 = vld [vmem:[%s0 + $0x148] sm:$0xff]
    %v71 = vld [vmem:[%s0 + $0x150] sm:$0xff]
    %v72 = vld [vmem:[%s0 + $0x158] sm:$0xff]
    %v73 = vld [vmem:[%s0 + $0x160] sm:$0xff]
    %v74 = vld [vmem:[%s0 + $0x168] sm:$0xff]
    %v75 = vld [vmem:[%s0 + $0x170] sm:$0xff]
    %v76 = vld [vmem:[%s0 + $0x178] sm:$0xff]
    %78 = vset.pattern.permute.xlu0 0
    %79 = vperm.xlu0 %78, %v28
    %v80 = vpop.permute.xlu0 %79
    %82 = vmatprep.subr.mxu0 %v30
    %83 = vmatpush1.msra.mxu0 %v29
    %84 = vmatprep.subr.mxu0 %v33
    %85 = vmatpush1.msra.mxu0 %v32
    %86 = vmatprep.subr.mxu0 %v36
    %87 = vmatpush1.msra.mxu0 %v35
    %88 = vmatprep.subr.mxu0 %v39
    %89 = vmatpush1.msra.mxu0 %v38
    %90 = vmatprep.subr.mxu0 %v42
    %91 = vmatpush1.msra.mxu0 %v41
    %92 = vmatprep.subr.mxu0 %v45
    %93 = vmatpush1.msra.mxu0 %v44
    %94 = vmatprep.subr.mxu0 %v48
    %95 = vmatpush1.msra.mxu0 %v47
    %96 = vmatprep.subr.mxu0 %v51
    %97 = vmatpush1.msra.mxu0 %v50
    %98 = vmatprep.subr.mxu0 %v54
    %99 = vmatpush1.msra.mxu0 %v53
    %100 = vmatprep.subr.mxu0 %v57
    %101 = vmatpush1.msra.mxu0 %v56
    %102 = vmatprep.subr.mxu0 %v60
    %103 = vmatpush1.msra.mxu0 %v59
    %104 = vmatprep.subr.mxu0 %v63
    %105 = vmatpush1.msra.mxu0 %v62
    %106 = vmatprep.subr.mxu0 %v66
    %107 = vmatpush1.msra.mxu0 %v65
    %108 = vmatprep.subr.mxu0 %v69
    %109 = vmatpush1.msra.mxu0 %v68
    %110 = vmatprep.subr.mxu0 %v72
    %111 = vmatpush1.msra.mxu0 %v71
    %112 = vmatprep.subr.mxu0 %v75
    %113 = vmatpush1.msra.mxu0 %v74
    %114 = vmatprep.subr.mxu0 0.0
    %115 = vmatpush1.msra.mxu0 0.0
    %116 = vmatprep.subr.mxu0 0.0
    %117 = vmatpush1.msra.mxu0 0.0
    %118 = vmatprep.subr.mxu0 0.0
    %119 = vmatpush1.msra.mxu0 0.0
    %120 = vmatprep.subr.mxu0 0.0
    %121 = vmatpush1.msra.mxu0 0.0
    %122 = vmatprep.subr.mxu0 0.0
    %123 = vmatpush1.msra.mxu0 0.0
    %124 = vmatprep.subr.mxu0 0.0
    %125 = vmatpush1.msra.mxu0 0.0
    %126 = vmatprep.subr.mxu0 0.0
    %127 = vmatpush1.msra.mxu0 0.0
    %128 = vmatprep.subr.mxu0 0.0
    %129 = vmatpush1.msra.mxu0 0.0
    %130 = vmatprep.subr.mxu0 0.0
    %131 = vmatpush1.msra.mxu0 0.0
    %132 = vmatprep.subr.mxu0 0.0
    %133 = vmatpush1.msra.mxu0 0.0
    %134 = vmatprep.subr.mxu0 0.0
    %135 = vmatpush1.msra.mxu0 0.0
    %136 = vmatprep.subr.mxu0 0.0
    %137 = vmatpush1.msra.mxu0 0.0
    %138 = vmatprep.subr.mxu0 0.0
    %139 = vmatpush1.msra.mxu0 0.0
    %140 = vmatprep.subr.mxu0 0.0
    %141 = vmatpush1.msra.mxu0 0.0
    %142 = vmatprep.subr.mxu0 0.0
    %143 = vmatpush1.msra.mxu0 0.0
    %144 = vmatprep.subr.mxu0 0.0
    %145 = vmatpush1.msra.mxu0 0.0
    %146 = vmatprep.mubr.f32.mxu0 0.0
    %147 = vmatmul.mubr.f32.gmra.mrb[0].mxu0 %v27
    %v148 = vpop.f32.mrb[0].mxu0
    %v149 = vadd.f32 %v80, %v148
    %v150 = vpop.f32.mrb[0].mxu0
    %v151 = vadd.f32 %v80, %v150
    %152 = vdwg.mxu0
    %153 = vmatprep.subr.mxu0 0.0
    %154 = vmatpush1.msra.mxu0 %v31
    %155 = vmatprep.subr.mxu0 0.0
    %156 = vmatpush1.msra.mxu0 %v34
    %157 = vmatprep.subr.mxu0 0.0
    %158 = vmatpush1.msra.mxu0 %v37
    %159 = vmatprep.subr.mxu0 0.0
    %160 = vmatpush1.msra.mxu0 %v40
    %161 = vmatprep.subr.mxu0 0.0
    %162 = vmatpush1.msra.mxu0 %v43
    %163 = vmatprep.subr.mxu0 0.0
    %164 = vmatpush1.msra.mxu0 %v46
    %165 = vmatprep.subr.mxu0 0.0
    %166 = vmatpush1.msra.mxu0 %v49
    %167 = vmatprep.subr.mxu0 0.0
    %168 = vmatpush1.msra.mxu0 %v52
    %169 = vmatprep.subr.mxu0 0.0
    %170 = vmatpush1.msra.mxu0 %v55
    %171 = vmatprep.subr.mxu0 0.0
    %172 = vmatpush1.msra.mxu0 %v58
    %173 = vmatprep.subr.mxu0 0.0
    %174 = vmatpush1.msra.mxu0 %v61
    %175 = vmatprep.subr.mxu0 0.0
    %176 = vmatpush1.msra.mxu0 %v64
    %177 = vmatprep.subr.mxu0 0.0
    %178 = vmatpush1.msra.mxu0 %v67
    %179 = vmatprep.subr.mxu0 0.0
    %180 = vmatpush1.msra.mxu0 %v70
    %181 = vmatprep.subr.mxu0 0.0
    %182 = vmatpush1.msra.mxu0 %v73
    %183 = vmatprep.subr.mxu0 0.0
    %184 = vmatpush1.msra.mxu0 %v76
    %185 = vmatprep.subr.mxu0 0.0
    %186 = vmatpush1.msra.mxu0 0.0
    %187 = vmatprep.subr.mxu0 0.0
    %188 = vmatpush1.msra.mxu0 0.0
    %189 = vmatprep.subr.mxu0 0.0
    %190 = vmatpush1.msra.mxu0 0.0
    %191 = vmatprep.subr.mxu0 0.0
    %192 = vmatpush1.msra.mxu0 0.0
    %193 = vmatprep.subr.mxu0 0.0
    %194 = vmatpush1.msra.mxu0 0.0
    %195 = vmatprep.subr.mxu0 0.0
    %196 = vmatpush1.msra.mxu0 0.0
    %197 = vmatprep.subr.mxu0 0.0
    %198 = vmatpush1.msra.mxu0 0.0
    %199 = vmatprep.subr.mxu0 0.0
    %200 = vmatpush1.msra.mxu0 0.0
    %201 = vmatprep.subr.mxu0 0.0
    %202 = vmatpush1.msra.mxu0 0.0
    %203 = vmatprep.subr.mxu0 0.0
    %204 = vmatpush1.msra.mxu0 0.0
    %205 = vmatprep.subr.mxu0 0.0
    %206 = vmatpush1.msra.mxu0 0.0
    %207 = vmatprep.subr.mxu0 0.0
    %208 = vmatpush1.msra.mxu0 0.0
    %209 = vmatprep.subr.mxu0 0.0
    %210 = vmatpush1.msra.mxu0 0.0
    %211 = vmatprep.subr.mxu0 0.0
    %212 = vmatpush1.msra.mxu0 0.0
    %213 = vmatprep.subr.mxu0 0.0
    %214 = vmatpush1.msra.mxu0 0.0
    %215 = vmatprep.subr.mxu0 0.0
    %216 = vmatpush1.msra.mxu0 0.0
    %217 = vmatprep.mubr.f32.mxu0 0.0
    %218 = vmatmul.mubr.f32.gmra.mrb[0].mxu0 %v27
    %v219 = vpop.f32.mrb[0].mxu0
    %v220 = vadd.f32 %v80, %v219
    %v221 = vpop.f32.mrb[0].mxu0
    %222 = vdwg.mxu0
    %v223 = vmax.f32 %v149, 0.0
    %v224 = vmax.f32 %v151, 0.0
    %v225 = vmax.f32 %v220, 0.0
    %s226 = scalar_lea.vmem %s0, 384
    %v227 = vld [vmem:[%s226] sm:$0xff]
    %v228 = vld [vmem:[%s226 + $0x8] sm:$0xff]
    %v229 = vld [vmem:[%s226 + $0x10] sm:$0xff]
    %v230 = vld [vmem:[%s226 + $0x18] sm:$0xff]
    %v231 = vld [vmem:[%s226 + $0x20] sm:$0xff]
    %v232 = vld [vmem:[%s226 + $0x28] sm:$0xff]
    %v233 = vld [vmem:[%s226 + $0x30] sm:$0xff]
    %v234 = vld [vmem:[%s226 + $0x38] sm:$0xff]
    %v235 = vld [vmem:[%s226 + $0x40] sm:$0xff]
    %v236 = vld [vmem:[%s226 + $0x48] sm:$0xff]
    %v237 = vld [vmem:[%s226 + $0x50] sm:$0xff]
    %v238 = vld [vmem:[%s226 + $0x58] sm:$0xff]
    %v239 = vld [vmem:[%s226 + $0x60] sm:$0xff]
    %v240 = vld [vmem:[%s226 + $0x68] sm:$0xff]
    %v241 = vld [vmem:[%s226 + $0x70] sm:$0xff]
    %v242 = vld [vmem:[%s226 + $0x78] sm:$0xff]
    %v243 = vld [vmem:[%s226 + $0x80] sm:$0xff]
    %v244 = vld [vmem:[%s226 + $0x88] sm:$0xff]
    %v245 = vld [vmem:[%s226 + $0x90] sm:$0xff]
    %v246 = vld [vmem:[%s226 + $0x98] sm:$0xff]
    %v247 = vld [vmem:[%s226 + $0xa0] sm:$0xff]
    %v248 = vld [vmem:[%s226 + $0xa8] sm:$0xff]
    %v249 = vld [vmem:[%s226 + $0xb0] sm:$0xff]
    %v250 = vld [vmem:[%s226 + $0xb8] sm:$0xff]
    %v251 = vld [vmem:[%s226 + $0xc0] sm:$0xff]
    %v252 = vld [vmem:[%s226 + $0xc8] sm:$0xff]
    %v253 = vld [vmem:[%s226 + $0xd0] sm:$0xff]
    %v254 = vld [vmem:[%s226 + $0xd8] sm:$0xff]
    %v255 = vld [vmem:[%s226 + $0xe0] sm:$0xff]
    %v256 = vld [vmem:[%s226 + $0xe8] sm:$0xff]
    %v257 = vld [vmem:[%s226 + $0xf0] sm:$0xff]
    %v258 = vld [vmem:[%s226 + $0xf8] sm:$0xff]
    %v259 = vld [vmem:[%s226 + $0x100] sm:$0xff]
    %v260 = vld [vmem:[%s226 + $0x108] sm:$0xff]
    %v261 = vld [vmem:[%s226 + $0x110] sm:$0xff]
    %v262 = vld [vmem:[%s226 + $0x118] sm:$0xff]
    %v263 = vld [vmem:[%s226 + $0x120] sm:$0xff]
    %v264 = vld [vmem:[%s226 + $0x128] sm:$0xff]
    %v265 = vld [vmem:[%s226 + $0x130] sm:$0xff]
    %v266 = vld [vmem:[%s226 + $0x138] sm:$0xff]
    %v267 = vld [vmem:[%s226 + $0x140] sm:$0xff]
    %v268 = vld [vmem:[%s226 + $0x148] sm:$0xff]
    %v269 = vld [vmem:[%s226 + $0x150] sm:$0xff]
    %v270 = vld [vmem:[%s226 + $0x158] sm:$0xff]
    %v271 = vld [vmem:[%s226 + $0x160] sm:$0xff]
    %v272 = vld [vmem:[%s226 + $0x168] sm:$0xff]
    %v273 = vld [vmem:[%s226 + $0x170] sm:$0xff]
    %v274 = vld [vmem:[%s226 + $0x178] sm:$0xff]
    %275 = vmatprep.subr.mxu0 %v228
    %276 = vmatpush1.msra.mxu0 %v227
    %277 = vmatprep.subr.mxu0 %v231
    %278 = vmatpush1.msra.mxu0 %v230
    %279 = vmatprep.subr.mxu0 %v234
    %280 = vmatpush1.msra.mxu0 %v233
    %281 = vmatprep.subr.mxu0 %v237
    %282 = vmatpush1.msra.mxu0 %v236
    %283 = vmatprep.subr.mxu0 %v240
    %284 = vmatpush1.msra.mxu0 %v239
    %285 = vmatprep.subr.mxu0 %v243
    %286 = vmatpush1.msra.mxu0 %v242
    %287 = vmatprep.subr.mxu0 %v246
    %288 = vmatpush1.msra.mxu0 %v245
    %289 = vmatprep.subr.mxu0 %v249
    %290 = vmatpush1.msra.mxu0 %v248
    %291 = vmatprep.subr.mxu0 %v252
    %292 = vmatpush1.msra.mxu0 %v251
    %293 = vmatprep.subr.mxu0 %v255
    %294 = vmatpush1.msra.mxu0 %v254
    %295 = vmatprep.subr.mxu0 %v258
    %296 = vmatpush1.msra.mxu0 %v257
    %297 = vmatprep.subr.mxu0 %v261
    %298 = vmatpush1.msra.mxu0 %v260
    %299 = vmatprep.subr.mxu0 %v264
    %300 = vmatpush1.msra.mxu0 %v263
    %301 = vmatprep.subr.mxu0 %v267
    %302 = vmatpush1.msra.mxu0 %v266
    %303 = vmatprep.subr.mxu0 %v270
    %304 = vmatpush1.msra.mxu0 %v269
    %305 = vmatprep.subr.mxu0 %v273
    %306 = vmatpush1.msra.mxu0 %v272
    %307 = vmatprep.subr.mxu0 0.0
    %308 = vmatpush1.msra.mxu0 0.0
    %309 = vmatprep.subr.mxu0 0.0
    %310 = vmatpush1.msra.mxu0 0.0
    %311 = vmatprep.subr.mxu0 0.0
    %312 = vmatpush1.msra.mxu0 0.0
    %313 = vmatprep.subr.mxu0 0.0
    %314 = vmatpush1.msra.mxu0 0.0
    %315 = vmatprep.subr.mxu0 0.0
    %316 = vmatpush1.msra.mxu0 0.0
    %317 = vmatprep.subr.mxu0 0.0
    %318 = vmatpush1.msra.mxu0 0.0
    %319 = vmatprep.subr.mxu0 0.0
    %320 = vmatpush1.msra.mxu0 0.0
    %321 = vmatprep.subr.mxu0 0.0
    %322 = vmatpush1.msra.mxu0 0.0
    %323 = vmatprep.subr.mxu0 0.0
    %324 = vmatpush1.msra.mxu0 0.0
    %325 = vmatprep.subr.mxu0 0.0
    %326 = vmatpush1.msra.mxu0 0.0
    %327 = vmatprep.subr.mxu0 0.0
    %328 = vmatpush1.msra.mxu0 0.0
    %329 = vmatprep.subr.mxu0 0.0
    %330 = vmatpush1.msra.mxu0 0.0
    %331 = vmatprep.subr.mxu0 0.0
    %332 = vmatpush1.msra.mxu0 0.0
    %333 = vmatprep.subr.mxu0 0.0
    %334 = vmatpush1.msra.mxu0 0.0
    %335 = vmatprep.subr.mxu0 0.0
    %336 = vmatpush1.msra.mxu0 0.0
    %337 = vmatprep.subr.mxu0 0.0
    %338 = vmatpush1.msra.mxu0 0.0
    %339 = vmatprep.mubr.f32.mxu0 0.0
    %340 = vmatmul.mubr.f32.gmra.mrb[0].mxu0 %v27
    %v341 = vpop.f32.mrb[0].mxu0
    %v342 = vadd.f32 %v80, %v341
    %v343 = vpop.f32.mrb[0].mxu0
    %v344 = vadd.f32 %v80, %v343
    %345 = vdwg.mxu0
    %346 = vmatprep.subr.mxu0 0.0
    %347 = vmatpush1.msra.mxu0 %v229
    %348 = vmatprep.subr.mxu0 0.0
    %349 = vmatpush1.msra.mxu0 %v232
    %350 = vmatprep.subr.mxu0 0.0
    %351 = vmatpush1.msra.mxu0 %v235
    %352 = vmatprep.subr.mxu0 0.0
    %353 = vmatpush1.msra.mxu0 %v238
    %354 = vmatprep.subr.mxu0 0.0
    %355 = vmatpush1.msra.mxu0 %v241
    %356 = vmatprep.subr.mxu0 0.0
    %357 = vmatpush1.msra.mxu0 %v244
    %358 = vmatprep.subr.mxu0 0.0
    %359 = vmatpush1.msra.mxu0 %v247
    %360 = vmatprep.subr.mxu0 0.0
    %361 = vmatpush1.msra.mxu0 %v250
    %362 = vmatprep.subr.mxu0 0.0
    %363 = vmatpush1.msra.mxu0 %v253
    %364 = vmatprep.subr.mxu0 0.0
    %365 = vmatpush1.msra.mxu0 %v256
    %366 = vmatprep.subr.mxu0 0.0
    %367 = vmatpush1.msra.mxu0 %v259
    %368 = vmatprep.subr.mxu0 0.0
    %369 = vmatpush1.msra.mxu0 %v262
    %370 = vmatprep.subr.mxu0 0.0
    %371 = vmatpush1.msra.mxu0 %v265
    %372 = vmatprep.subr.mxu0 0.0
    %373 = vmatpush1.msra.mxu0 %v268
    %374 = vmatprep.subr.mxu0 0.0
    %375 = vmatpush1.msra.mxu0 %v271
    %376 = vmatprep.subr.mxu0 0.0
    %377 = vmatpush1.msra.mxu0 %v274
    %378 = vmatprep.subr.mxu0 0.0
    %379 = vmatpush1.msra.mxu0 0.0
    %380 = vmatprep.subr.mxu0 0.0
    %381 = vmatpush1.msra.mxu0 0.0
    %382 = vmatprep.subr.mxu0 0.0
    %383 = vmatpush1.msra.mxu0 0.0
    %384 = vmatprep.subr.mxu0 0.0
    %385 = vmatpush1.msra.mxu0 0.0
    %386 = vmatprep.subr.mxu0 0.0
    %387 = vmatpush1.msra.mxu0 0.0
    %388 = vmatprep.subr.mxu0 0.0
    %389 = vmatpush1.msra.mxu0 0.0
    %390 = vmatprep.subr.mxu0 0.0
    %391 = vmatpush1.msra.mxu0 0.0
    %392 = vmatprep.subr.mxu0 0.0
    %393 = vmatpush1.msra.mxu0 0.0
    %394 = vmatprep.subr.mxu0 0.0
    %395 = vmatpush1.msra.mxu0 0.0
    %396 = vmatprep.subr.mxu0 0.0
    %397 = vmatpush1.msra.mxu0 0.0
    %398 = vmatprep.subr.mxu0 0.0
    %399 = vmatpush1.msra.mxu0 0.0
    %400 = vmatprep.subr.mxu0 0.0
    %401 = vmatpush1.msra.mxu0 0.0
    %402 = vmatprep.subr.mxu0 0.0
    %403 = vmatpush1.msra.mxu0 0.0
    %404 = vmatprep.subr.mxu0 0.0
    %405 = vmatpush1.msra.mxu0 0.0
    %406 = vmatprep.subr.mxu0 0.0
    %407 = vmatpush1.msra.mxu0 0.0
    %408 = vmatprep.subr.mxu0 0.0
    %409 = vmatpush1.msra.mxu0 0.0
    %410 = vmatprep.mubr.f32.mxu0 0.0
    %411 = vmatmul.mubr.f32.gmra.mrb[0].mxu0 %v27
    %v412 = vpop.f32.mrb[0].mxu0
    %v413 = vadd.f32 %v80, %v412
    %v414 = vpop.f32.mrb[0].mxu0
    %415 = vdwg.mxu0
    %v416 = vmax.f32 %v342, 0.0
    %v417 = vmax.f32 %v344, 0.0
    %v418 = vmax.f32 %v413, 0.0
    %v419 = vmax.f32 %v223, %v416
    %v420 = vmax.f32 %v224, %v417
    %v421 = vmax.f32 %v225, %v418
    %s422 = scalar_lea.vmem %s0, 768
    %v423 = vld [vmem:[%s422] sm:$0xff]
    %v424 = vld [vmem:[%s422 + $0x8] sm:$0xff]
    %v425 = vld [vmem:[%s422 + $0x10] sm:$0xff]
    %v426 = vld [vmem:[%s422 + $0x18] sm:$0xff]
    %v427 = vld [vmem:[%s422 + $0x20] sm:$0xff]
    %v428 = vld [vmem:[%s422 + $0x28] sm:$0xff]
    %v429 = vld [vmem:[%s422 + $0x30] sm:$0xff]
    %v430 = vld [vmem:[%s422 + $0x38] sm:$0xff]
    %v431 = vld [vmem:[%s422 + $0x40] sm:$0xff]
    %v432 = vld [vmem:[%s422 + $0x48] sm:$0xff]
    %v433 = vld [vmem:[%s422 + $0x50] sm:$0xff]
    %v434 = vld [vmem:[%s422 + $0x58] sm:$0xff]
    %v435 = vld [vmem:[%s422 + $0x60] sm:$0xff]
    %v436 = vld [vmem:[%s422 + $0x68] sm:$0xff]
    %v437 = vld [vmem:[%s422 + $0x70] sm:$0xff]
    %v438 = vld [vmem:[%s422 + $0x78] sm:$0xff]
    %v439 = vld [vmem:[%s422 + $0x80] sm:$0xff]
    %v440 = vld [vmem:[%s422 + $0x88] sm:$0xff]
    %v441 = vld [vmem:[%s422 + $0x90] sm:$0xff]
    %v442 = vld [vmem:[%s422 + $0x98] sm:$0xff]
    %v443 = vld [vmem:[%s422 + $0xa0] sm:$0xff]
    %v444 = vld [vmem:[%s422 + $0xa8] sm:$0xff]
    %v445 = vld [vmem:[%s422 + $0xb0] sm:$0xff]
    %v446 = vld [vmem:[%s422 + $0xb8] sm:$0xff]
    %v447 = vld [vmem:[%s422 + $0xc0] sm:$0xff]
    %v448 = vld [vmem:[%s422 + $0xc8] sm:$0xff]
    %v449 = vld [vmem:[%s422 + $0xd0] sm:$0xff]
    %v450 = vld [vmem:[%s422 + $0xd8] sm:$0xff]
    %v451 = vld [vmem:[%s422 + $0xe0] sm:$0xff]
    %v452 = vld [vmem:[%s422 + $0xe8] sm:$0xff]
    %v453 = vld [vmem:[%s422 + $0xf0] sm:$0xff]
    %v454 = vld [vmem:[%s422 + $0xf8] sm:$0xff]
    %v455 = vld [vmem:[%s422 + $0x100] sm:$0xff]
    %v456 = vld [vmem:[%s422 + $0x108] sm:$0xff]
    %v457 = vld [vmem:[%s422 + $0x110] sm:$0xff]
    %v458 = vld [vmem:[%s422 + $0x118] sm:$0xff]
    %v459 = vld [vmem:[%s422 + $0x120] sm:$0xff]
    %v460 = vld [vmem:[%s422 + $0x128] sm:$0xff]
    %v461 = vld [vmem:[%s422 + $0x130] sm:$0xff]
    %v462 = vld [vmem:[%s422 + $0x138] sm:$0xff]
    %v463 = vld [vmem:[%s422 + $0x140] sm:$0xff]
    %v464 = vld [vmem:[%s422 + $0x148] sm:$0xff]
    %v465 = vld [vmem:[%s422 + $0x150] sm:$0xff]
    %v466 = vld [vmem:[%s422 + $0x158] sm:$0xff]
    %v467 = vld [vmem:[%s422 + $0x160] sm:$0xff]
    %v468 = vld [vmem:[%s422 + $0x168] sm:$0xff]
    %v469 = vld [vmem:[%s422 + $0x170] sm:$0xff]
    %v470 = vld [vmem:[%s422 + $0x178] sm:$0xff]
    %471 = vmatprep.subr.mxu0 %v424
    %472 = vmatpush1.msra.mxu0 %v423
    %473 = vmatprep.subr.mxu0 %v427
    %474 = vmatpush1.msra.mxu0 %v426
    %475 = vmatprep.subr.mxu0 %v430
    %476 = vmatpush1.msra.mxu0 %v429
    %477 = vmatprep.subr.mxu0 %v433
    %478 = vmatpush1.msra.mxu0 %v432
    %479 = vmatprep.subr.mxu0 %v436
    %480 = vmatpush1.msra.mxu0 %v435
    %481 = vmatprep.subr.mxu0 %v439
    %482 = vmatpush1.msra.mxu0 %v438
    %483 = vmatprep.subr.mxu0 %v442
    %484 = vmatpush1.msra.mxu0 %v441
    %485 = vmatprep.subr.mxu0 %v445
    %486 = vmatpush1.msra.mxu0 %v444
    %487 = vmatprep.subr.mxu0 %v448
    %488 = vmatpush1.msra.mxu0 %v447
    %489 = vmatprep.subr.mxu0 %v451
    %490 = vmatpush1.msra.mxu0 %v450
    %491 = vmatprep.subr.mxu0 %v454
    %492 = vmatpush1.msra.mxu0 %v453
    %493 = vmatprep.subr.mxu0 %v457
    %494 = vmatpush1.msra.mxu0 %v456
    %495 = vmatprep.subr.mxu0 %v460
    %496 = vmatpush1.msra.mxu0 %v459
    %497 = vmatprep.subr.mxu0 %v463
    %498 = vmatpush1.msra.mxu0 %v462
    %499 = vmatprep.subr.mxu0 %v466
    %500 = vmatpush1.msra.mxu0 %v465
    %501 = vmatprep.subr.mxu0 %v469
    %502 = vmatpush1.msra.mxu0 %v468
    %503 = vmatprep.subr.mxu0 0.0
    %504 = vmatpush1.msra.mxu0 0.0
    %505 = vmatprep.subr.mxu0 0.0
    %506 = vmatpush1.msra.mxu0 0.0
    %507 = vmatprep.subr.mxu0 0.0
    %508 = vmatpush1.msra.mxu0 0.0
    %509 = vmatprep.subr.mxu0 0.0
    %510 = vmatpush1.msra.mxu0 0.0
    %511 = vmatprep.subr.mxu0 0.0
    %512 = vmatpush1.msra.mxu0 0.0
    %513 = vmatprep.subr.mxu0 0.0
    %514 = vmatpush1.msra.mxu0 0.0
    %515 = vmatprep.subr.mxu0 0.0
    %516 = vmatpush1.msra.mxu0 0.0
    %517 = vmatprep.subr.mxu0 0.0
    %518 = vmatpush1.msra.mxu0 0.0
    %519 = vmatprep.subr.mxu0 0.0
    %520 = vmatpush1.msra.mxu0 0.0
    %521 = vmatprep.subr.mxu0 0.0
    %522 = vmatpush1.msra.mxu0 0.0
    %523 = vmatprep.subr.mxu0 0.0
    %524 = vmatpush1.msra.mxu0 0.0
    %525 = vmatprep.subr.mxu0 0.0
    %526 = vmatpush1.msra.mxu0 0.0
    %527 = vmatprep.subr.mxu0 0.0
    %528 = vmatpush1.msra.mxu0 0.0
    %529 = vmatprep.subr.mxu0 0.0
    %530 = vmatpush1.msra.mxu0 0.0
    %531 = vmatprep.subr.mxu0 0.0
    %532 = vmatpush1.msra.mxu0 0.0
    %533 = vmatprep.subr.mxu0 0.0
    %534 = vmatpush1.msra.mxu0 0.0
    %535 = vmatprep.mubr.f32.mxu0 0.0
    %536 = vmatmul.mubr.f32.gmra.mrb[0].mxu0 %v27
    %v537 = vpop.f32.mrb[0].mxu0
    %v538 = vadd.f32 %v80, %v537
    %v539 = vpop.f32.mrb[0].mxu0
    %v540 = vadd.f32 %v80, %v539
    %541 = vdwg.mxu0
    %542 = vmatprep.subr.mxu0 0.0
    %543 = vmatpush1.msra.mxu0 %v425
    %544 = vmatprep.subr.mxu0 0.0
    %545 = vmatpush1.msra.mxu0 %v428
    %546 = vmatprep.subr.mxu0 0.0
    %547 = vmatpush1.msra.mxu0 %v431
    %548 = vmatprep.subr.mxu0 0.0
    %549 = vmatpush1.msra.mxu0 %v434
    %550 = vmatprep.subr.mxu0 0.0
    %551 = vmatpush1.msra.mxu0 %v437
    %552 = vmatprep.subr.mxu0 0.0
    %553 = vmatpush1.msra.mxu0 %v440
    %554 = vmatprep.subr.mxu0 0.0
    %555 = vmatpush1.msra.mxu0 %v443
    %556 = vmatprep.subr.mxu0 0.0
    %557 = vmatpush1.msra.mxu0 %v446
    %558 = vmatprep.subr.mxu0 0.0
    %559 = vmatpush1.msra.mxu0 %v449
    %560 = vmatprep.subr.mxu0 0.0
    %561 = vmatpush1.msra.mxu0 %v452
    %562 = vmatprep.subr.mxu0 0.0
    %563 = vmatpush1.msra.mxu0 %v455
    %564 = vmatprep.subr.mxu0 0.0
    %565 = vmatpush1.msra.mxu0 %v458
    %566 = vmatprep.subr.mxu0 0.0
    %567 = vmatpush1.msra.mxu0 %v461
    %568 = vmatprep.subr.mxu0 0.0
    %569 = vmatpush1.msra.mxu0 %v464
    %570 = vmatprep.subr.mxu0 0.0
    %571 = vmatpush1.msra.mxu0 %v467
    %572 = vmatprep.subr.mxu0 0.0
    %573 = vmatpush1.msra.mxu0 %v470
    %574 = vmatprep.subr.mxu0 0.0
    %575 = vmatpush1.msra.mxu0 0.0
    %576 = vmatprep.subr.mxu0 0.0
    %577 = vmatpush1.msra.mxu0 0.0
    %578 = vmatprep.subr.mxu0 0.0
    %579 = vmatpush1.msra.mxu0 0.0
    %580 = vmatprep.subr.mxu0 0.0
    %581 = vmatpush1.msra.mxu0 0.0
    %582 = vmatprep.subr.mxu0 0.0
    %583 = vmatpush1.msra.mxu0 0.0
    %584 = vmatprep.subr.mxu0 0.0
    %585 = vmatpush1.msra.mxu0 0.0
    %586 = vmatprep.subr.mxu0 0.0
    %587 = vmatpush1.msra.mxu0 0.0
    %588 = vmatprep.subr.mxu0 0.0
    %589 = vmatpush1.msra.mxu0 0.0
    %590 = vmatprep.subr.mxu0 0.0
    %591 = vmatpush1.msra.mxu0 0.0
    %592 = vmatprep.subr.mxu0 0.0
    %593 = vmatpush1.msra.mxu0 0.0
    %594 = vmatprep.subr.mxu0 0.0
    %595 = vmatpush1.msra.mxu0 0.0
    %596 = vmatprep.subr.mxu0 0.0
    %597 = vmatpush1.msra.mxu0 0.0
    %598 = vmatprep.subr.mxu0 0.0
    %599 = vmatpush1.msra.mxu0 0.0
    %600 = vmatprep.subr.mxu0 0.0
    %601 = vmatpush1.msra.mxu0 0.0
    %602 = vmatprep.subr.mxu0 0.0
    %603 = vmatpush1.msra.mxu0 0.0
    %604 = vmatprep.subr.mxu0 0.0
    %605 = vmatpush1.msra.mxu0 0.0
    %606 = vmatprep.mubr.f32.mxu0 0.0
    %607 = vmatmul.mubr.f32.gmra.mrb[0].mxu0 %v27
    %v608 = vpop.f32.mrb[0].mxu0
    %v609 = vadd.f32 %v80, %v608
    %v610 = vpop.f32.mrb[0].mxu0
    %611 = vdwg.mxu0
    %v612 = vmax.f32 %v538, 0.0
    %v613 = vmax.f32 %v540, 0.0
    %v614 = vmax.f32 %v609, 0.0
    %v615 = vmax.f32 %v419, %v612
    %v616 = vmax.f32 %v420, %v613
    %v617 = vmax.f32 %v421, %v614
    %s618 = scalar_lea.vmem %s0, 1152
    %v619 = vld [vmem:[%s618] sm:$0xff]
    %v620 = vld [vmem:[%s618 + $0x8] sm:$0xff]
    %v621 = vld [vmem:[%s618 + $0x10] sm:$0xff]
    %v622 = vld [vmem:[%s618 + $0x18] sm:$0xff]
    %v623 = vld [vmem:[%s618 + $0x20] sm:$0xff]
    %v624 = vld [vmem:[%s618 + $0x28] sm:$0xff]
    %v625 = vld [vmem:[%s618 + $0x30] sm:$0xff]
    %v626 = vld [vmem:[%s618 + $0x38] sm:$0xff]
    %v627 = vld [vmem:[%s618 + $0x40] sm:$0xff]
    %v628 = vld [vmem:[%s618 + $0x48] sm:$0xff]
    %v629 = vld [vmem:[%s618 + $0x50] sm:$0xff]
    %v630 = vld [vmem:[%s618 + $0x58] sm:$0xff]
    %v631 = vld [vmem:[%s618 + $0x60] sm:$0xff]
    %v632 = vld [vmem:[%s618 + $0x68] sm:$0xff]
    %v633 = vld [vmem:[%s618 + $0x70] sm:$0xff]
    %v634 = vld [vmem:[%s618 + $0x78] sm:$0xff]
    %v635 = vld [vmem:[%s618 + $0x80] sm:$0xff]
    %v636 = vld [vmem:[%s618 + $0x88] sm:$0xff]
    %v637 = vld [vmem:[%s618 + $0x90] sm:$0xff]
    %v638 = vld [vmem:[%s618 + $0x98] sm:$0xff]
    %v639 = vld [vmem:[%s618 + $0xa0] sm:$0xff]
    %v640 = vld [vmem:[%s618 + $0xa8] sm:$0xff]
    %v641 = vld [vmem:[%s618 + $0xb0] sm:$0xff]
    %v642 = vld [vmem:[%s618 + $0xb8] sm:$0xff]
    %v643 = vld [vmem:[%s618 + $0xc0] sm:$0xff]
    %v644 = vld [vmem:[%s618 + $0xc8] sm:$0xff]
    %v645 = vld [vmem:[%s618 + $0xd0] sm:$0xff]
    %v646 = vld [vmem:[%s618 + $0xd8] sm:$0xff]
    %v647 = vld [vmem:[%s618 + $0xe0] sm:$0xff]
    %v648 = vld [vmem:[%s618 + $0xe8] sm:$0xff]
    %v649 = vld [vmem:[%s618 + $0xf0] sm:$0xff]
    %v650 = vld [vmem:[%s618 + $0xf8] sm:$0xff]
    %v651 = vld [vmem:[%s618 + $0x100] sm:$0xff]
    %v652 = vld [vmem:[%s618 + $0x108] sm:$0xff]
    %v653 = vld [vmem:[%s618 + $0x110] sm:$0xff]
    %v654 = vld [vmem:[%s618 + $0x118] sm:$0xff]
    %v655 = vld [vmem:[%s618 + $0x120] sm:$0xff]
    %v656 = vld [vmem:[%s618 + $0x128] sm:$0xff]
    %v657 = vld [vmem:[%s618 + $0x130] sm:$0xff]
    %v658 = vld [vmem:[%s618 + $0x138] sm:$0xff]
    %v659 = vld [vmem:[%s618 + $0x140] sm:$0xff]
    %v660 = vld [vmem:[%s618 + $0x148] sm:$0xff]
    %v661 = vld [vmem:[%s618 + $0x150] sm:$0xff]
    %v662 = vld [vmem:[%s618 + $0x158] sm:$0xff]
    %v663 = vld [vmem:[%s618 + $0x160] sm:$0xff]
    %v664 = vld [vmem:[%s618 + $0x168] sm:$0xff]
    %v665 = vld [vmem:[%s618 + $0x170] sm:$0xff]
    %v666 = vld [vmem:[%s618 + $0x178] sm:$0xff]
    %667 = vmatprep.subr.mxu0 %v620
    %668 = vmatpush1.msra.mxu0 %v619
    %669 = vmatprep.subr.mxu0 %v623
    %670 = vmatpush1.msra.mxu0 %v622
    %671 = vmatprep.subr.mxu0 %v626
    %672 = vmatpush1.msra.mxu0 %v625
    %673 = vmatprep.subr.mxu0 %v629
    %674 = vmatpush1.msra.mxu0 %v628
    %675 = vmatprep.subr.mxu0 %v632
    %676 = vmatpush1.msra.mxu0 %v631
    %677 = vmatprep.subr.mxu0 %v635
    %678 = vmatpush1.msra.mxu0 %v634
    %679 = vmatprep.subr.mxu0 %v638
    %680 = vmatpush1.msra.mxu0 %v637
    %681 = vmatprep.subr.mxu0 %v641
    %682 = vmatpush1.msra.mxu0 %v640
    %683 = vmatprep.subr.mxu0 %v644
    %684 = vmatpush1.msra.mxu0 %v643
    %685 = vmatprep.subr.mxu0 %v647
    %686 = vmatpush1.msra.mxu0 %v646
    %687 = vmatprep.subr.mxu0 %v650
    %688 = vmatpush1.msra.mxu0 %v649
    %689 = vmatprep.subr.mxu0 %v653
    %690 = vmatpush1.msra.mxu0 %v652
    %691 = vmatprep.subr.mxu0 %v656
    %692 = vmatpush1.msra.mxu0 %v655
    %693 = vmatprep.subr.mxu0 %v659
    %694 = vmatpush1.msra.mxu0 %v658
    %695 = vmatprep.subr.mxu0 %v662
    %696 = vmatpush1.msra.mxu0 %v661
    %697 = vmatprep.subr.mxu0 %v665
    %698 = vmatpush1.msra.mxu0 %v664
    %699 = vmatprep.subr.mxu0 0.0
    %700 = vmatpush1.msra.mxu0 0.0
    %701 = vmatprep.subr.mxu0 0.0
    %702 = vmatpush1.msra.mxu0 0.0
    %703 = vmatprep.subr.mxu0 0.0
    %704 = vmatpush1.msra.mxu0 0.0
    %705 = vmatprep.subr.mxu0 0.0
    %706 = vmatpush1.msra.mxu0 0.0
    %707 = vmatprep.subr.mxu0 0.0
    %708 = vmatpush1.msra.mxu0 0.0
    %709 = vmatprep.subr.mxu0 0.0
    %710 = vmatpush1.msra.mxu0 0.0
    %711 = vmatprep.subr.mxu0 0.0
    %712 = vmatpush1.msra.mxu0 0.0
    %713 = vmatprep.subr.mxu0 0.0
    %714 = vmatpush1.msra.mxu0 0.0
    %715 = vmatprep.subr.mxu0 0.0
    %716 = vmatpush1.msra.mxu0 0.0
    %717 = vmatprep.subr.mxu0 0.0
    %718 = vmatpush1.msra.mxu0 0.0
    %719 = vmatprep.subr.mxu0 0.0
    %720 = vmatpush1.msra.mxu0 0.0
    %721 = vmatprep.subr.mxu0 0.0
    %722 = vmatpush1.msra.mxu0 0.0
    %723 = vmatprep.subr.mxu0 0.0
    %724 = vmatpush1.msra.mxu0 0.0
    %725 = vmatprep.subr.mxu0 0.0
    %726 = vmatpush1.msra.mxu0 0.0
    %727 = vmatprep.subr.mxu0 0.0
    %728 = vmatpush1.msra.mxu0 0.0
    %729 = vmatprep.subr.mxu0 0.0
    %730 = vmatpush1.msra.mxu0 0.0
    %731 = vmatprep.mubr.f32.mxu0 0.0
    %732 = vmatmul.mubr.f32.gmra.mrb[0].mxu0 %v27
    %v733 = vpop.f32.mrb[0].mxu0
    %v734 = vadd.f32 %v80, %v733
    %v735 = vpop.f32.mrb[0].mxu0
    %v736 = vadd.f32 %v80, %v735
    %737 = vdwg.mxu0
    %738 = vmatprep.subr.mxu0 0.0
    %739 = vmatpush1.msra.mxu0 %v621
    %740 = vmatprep.subr.mxu0 0.0
    %741 = vmatpush1.msra.mxu0 %v624
    %742 = vmatprep.subr.mxu0 0.0
    %743 = vmatpush1.msra.mxu0 %v627
    %744 = vmatprep.subr.mxu0 0.0
    %745 = vmatpush1.msra.mxu0 %v630
    %746 = vmatprep.subr.mxu0 0.0
    %747 = vmatpush1.msra.mxu0 %v633
    %748 = vmatprep.subr.mxu0 0.0
    %749 = vmatpush1.msra.mxu0 %v636
    %750 = vmatprep.subr.mxu0 0.0
    %751 = vmatpush1.msra.mxu0 %v639
    %752 = vmatprep.subr.mxu0 0.0
    %753 = vmatpush1.msra.mxu0 %v642
    %754 = vmatprep.subr.mxu0 0.0
    %755 = vmatpush1.msra.mxu0 %v645
    %756 = vmatprep.subr.mxu0 0.0
    %757 = vmatpush1.msra.mxu0 %v648
    %758 = vmatprep.subr.mxu0 0.0
    %759 = vmatpush1.msra.mxu0 %v651
    %760 = vmatprep.subr.mxu0 0.0
    %761 = vmatpush1.msra.mxu0 %v654
    %762 = vmatprep.subr.mxu0 0.0
    %763 = vmatpush1.msra.mxu0 %v657
    %764 = vmatprep.subr.mxu0 0.0
    %765 = vmatpush1.msra.mxu0 %v660
    %766 = vmatprep.subr.mxu0 0.0
    %767 = vmatpush1.msra.mxu0 %v663
    %768 = vmatprep.subr.mxu0 0.0
    %769 = vmatpush1.msra.mxu0 %v666
    %770 = vmatprep.subr.mxu0 0.0
    %771 = vmatpush1.msra.mxu0 0.0
    %772 = vmatprep.subr.mxu0 0.0
    %773 = vmatpush1.msra.mxu0 0.0
    %774 = vmatprep.subr.mxu0 0.0
    %775 = vmatpush1.msra.mxu0 0.0
    %776 = vmatprep.subr.mxu0 0.0
    %777 = vmatpush1.msra.mxu0 0.0
    %778 = vmatprep.subr.mxu0 0.0
    %779 = vmatpush1.msra.mxu0 0.0
    %780 = vmatprep.subr.mxu0 0.0
    %781 = vmatpush1.msra.mxu0 0.0
    %782 = vmatprep.subr.mxu0 0.0
    %783 = vmatpush1.msra.mxu0 0.0
    %784 = vmatprep.subr.mxu0 0.0
    %785 = vmatpush1.msra.mxu0 0.0
    %786 = vmatprep.subr.mxu0 0.0
    %787 = vmatpush1.msra.mxu0 0.0
    %788 = vmatprep.subr.mxu0 0.0
    %789 = vmatpush1.msra.mxu0 0.0
    %790 = vmatprep.subr.mxu0 0.0
    %791 = vmatpush1.msra.mxu0 0.0
    %792 = vmatprep.subr.mxu0 0.0
    %793 = vmatpush1.msra.mxu0 0.0
    %794 = vmatprep.subr.mxu0 0.0
    %795 = vmatpush1.msra.mxu0 0.0
    %796 = vmatprep.subr.mxu0 0.0
    %797 = vmatpush1.msra.mxu0 0.0
    %798 = vmatprep.subr.mxu0 0.0
    %799 = vmatpush1.msra.mxu0 0.0
    %800 = vmatprep.subr.mxu0 0.0
    %801 = vmatpush1.msra.mxu0 0.0
    %802 = vmatprep.mubr.f32.mxu0 0.0
    %803 = vmatmul.mubr.f32.gmra.mrb[0].mxu0 %v27
    %v804 = vpop.f32.mrb[0].mxu0
    %v805 = vadd.f32 %v80, %v804
    %v806 = vpop.f32.mrb[0].mxu0
    %807 = vdwg.mxu0
    %v808 = vmax.f32 %v734, 0.0
    %v809 = vmax.f32 %v736, 0.0
    %v810 = vmax.f32 %v805, 0.0
    %v811 = vmax.f32 %v615, %v808
    %v812 = vmax.f32 %v616, %v809
    %v813 = vmax.f32 %v617, %v810
    %814 = vst [vmem:[#allocation2] sm:$0xff] %v811
    %815 = vst [vmem:[#allocation2 + $0x8] sm:$0xff] %v812
    %vm816 = vcmask 261120
    %817 = vst.msk [vmem:[#allocation2 + $0x10] sm:$0xff] %vm816, %v813
    %v818 = vld [vmem:[#allocation2] ss:$8 sm:$0x3]
    %v819 = vlaneseq
    %vm820 = vcmp.ge.s32.totalorder %v819, 0
    %vm821 = vcmp.lt.s32.totalorder %v819, 144
    %vm822 = vmand %vm820, %vm821
    %823 = vst.msk [vmem:[#allocation3] ss:$2 sm:$0x3] %vm822, %v818
    %s824 = scalar_lea.vmem [#allocation2], 1
    %v825 = vld [vmem:[%s824] ss:$8 sm:$0x3]
    %827 = vrot.lane.b32.xlu0 %v825, 16
    %v828 = vpop.permute.xlu0 %827
    %v829 = vrot.slane %v828, 7
    %vm830 = vcmask 130048
    %v831 = vsel %vm830, %v829, %v828
    %vm833 = vcmp.ge.s32.totalorder %v819, 16
    %vm834 = vcmp.lt.s32.totalorder %v819, 160
    %vm835 = vmand %vm833, %vm834
    %s836 = scalar_lea.vmem [#allocation3], 2
    %837 = vst.msk [vmem:[%s836] ss:$2 sm:$0x3] %vm835, %v831
    %s838 = scalar_lea.vmem [#allocation2], 2
    %v839 = vld [vmem:[%s838] ss:$8 sm:$0x3]
    %841 = vrot.lane.b32.xlu0 %v839, 32
    %v842 = vpop.permute.xlu0 %841
    %v843 = vrot.slane %v842, 7
    %v844 = vsel %vm816, %v843, %v842
    %vm846 = vcmp.ge.s32.totalorder %v819, 32
    %vm847 = vcmp.lt.s32.totalorder %v819, 176
    %vm848 = vmand %vm846, %vm847
    %s849 = scalar_lea.vmem [#allocation3], 4
    %850 = vst.msk [vmem:[%s849] ss:$2 sm:$0x3] %vm848, %v844
    %s851 = scalar_lea.vmem [#allocation2], 3
    %v852 = vld [vmem:[%s851] ss:$8 sm:$0x3]
    %854 = vrot.lane.b32.xlu0 %v852, 48
    %v855 = vpop.permute.xlu0 %854
    %v856 = vrot.slane %v855, 7
    %vm857 = vcmask 392192
    %v858 = vsel %vm857, %v856, %v855
    %vm860 = vcmp.ge.s32.totalorder %v819, 48
    %vm861 = vcmp.lt.s32.totalorder %v819, 192
    %vm862 = vmand %vm860, %vm861
    %s863 = scalar_lea.vmem [#allocation3], 6
    %864 = vst.msk [vmem:[%s863] ss:$2 sm:$0x3] %vm862, %v858
    %s865 = scalar_lea.vmem [#allocation2], 4
    %v866 = vld [vmem:[%s865] ss:$8 sm:$0x3]
    %868 = vrot.lane.b32.xlu0 %v866, 64
    %v869 = vpop.permute.xlu0 %868
    %v870 = vrot.slane %v869, 7
    %vm871 = vcmask 523264
    %v872 = vsel %vm871, %v870, %v869
    %vm874 = vcmp.ge.s32.totalorder %v819, 64
    %vm875 = vcmp.lt.s32.totalorder %v819, 208
    %vm876 = vmand %vm874, %vm875
    %s877 = scalar_lea.vmem [#allocation3], 8
    %878 = vst.msk [vmem:[%s877] ss:$2 sm:$0x3] %vm876, %v872
    %s879 = scalar_lea.vmem [#allocation2], 5
    %v880 = vld [vmem:[%s879] ss:$8 sm:$0x3]
    %882 = vrot.lane.b32.xlu0 %v880, 80
    %v883 = vpop.permute.xlu0 %882
    %v884 = vrot.slane %v883, 7
    %vm885 = vcmask 654336
    %v886 = vsel %vm885, %v884, %v883
    %vm888 = vcmp.ge.s32.totalorder %v819, 80
    %vm889 = vcmp.lt.s32.totalorder %v819, 224
    %vm890 = vmand %vm888, %vm889
    %s891 = scalar_lea.vmem [#allocation3], 10
    %892 = vst.msk [vmem:[%s891] ss:$2 sm:$0x3] %vm890, %v886
    %s893 = scalar_lea.vmem [#allocation2], 8
    %v894 = vld [vmem:[%s893] ss:$8 sm:$0x3]
    %896 = vrot.lane.b32.xlu0 %v894, 112
    %v897 = vpop.permute.xlu0 %896
    %v898 = vrot.slane %v897, 1
    %vm899 = vcmask 916480
    %v900 = vsel %vm899, %v897, %v898
    %s902 = scalar_lea.vmem [#allocation3], 1
    %903 = vst.msk [vmem:[%s902] ss:$2 sm:$0x3] %vm822, %v900
    %s904 = scalar_lea.vmem [#allocation2], 9
    %v905 = vld [vmem:[%s904] ss:$8 sm:$0x3]
    %s906 = scalar_lea.vmem [#allocation3], 3
    %907 = vst.msk [vmem:[%s906] ss:$2 sm:$0x3] %vm835, %v905
    %s908 = scalar_lea.vmem [#allocation2], 10
    %v909 = vld [vmem:[%s908] ss:$8 sm:$0x3]
    %911 = vrot.lane.b32.xlu0 %v909, 16
    %v912 = vpop.permute.xlu0 %911
    %v913 = vrot.slane %v912, 7
    %v914 = vsel %vm830, %v913, %v912
    %s916 = scalar_lea.vmem [#allocation3], 5
    %917 = vst.msk [vmem:[%s916] ss:$2 sm:$0x3] %vm848, %v914
    %s918 = scalar_lea.vmem [#allocation2], 11
    %v919 = vld [vmem:[%s918] ss:$8 sm:$0x3]
    %921 = vrot.lane.b32.xlu0 %v919, 32
    %v922 = vpop.permute.xlu0 %921
    %v923 = vrot.slane %v922, 7
    %v924 = vsel %vm816, %v923, %v922
    %s926 = scalar_lea.vmem [#allocation3], 7
    %927 = vst.msk [vmem:[%s926] ss:$2 sm:$0x3] %vm862, %v924
    %s928 = scalar_lea.vmem [#allocation2], 12
    %v929 = vld [vmem:[%s928] ss:$8 sm:$0x3]
    %931 = vrot.lane.b32.xlu0 %v929, 48
    %v932 = vpop.permute.xlu0 %931
    %v933 = vrot.slane %v932, 7
    %v934 = vsel %vm857, %v933, %v932
    %s936 = scalar_lea.vmem [#allocation3], 9
    %937 = vst.msk [vmem:[%s936] ss:$2 sm:$0x3] %vm876, %v934
    %s938 = scalar_lea.vmem [#allocation2], 13
    %v939 = vld [vmem:[%s938] ss:$8 sm:$0x3]
    %941 = vrot.lane.b32.xlu0 %v939, 64
    %v942 = vpop.permute.xlu0 %941
    %v943 = vrot.slane %v942, 7
    %v944 = vsel %vm871, %v943, %v942
    %s946 = scalar_lea.vmem [#allocation3], 11
    %947 = vst.msk [vmem:[%s946] ss:$2 sm:$0x3] %vm890, %v944
    %v948 = vld [vmem:[#allocation3] sm:$0xff]
    %v949 = vld [vmem:[#allocation3 + $0x8] sm:$0x3f]
    %v950 = vld [vmem:[%s3] sm:$0xff]
    %v951 = vld [vmem:[%s3 + $0x8] sm:$0xff]
    %v952 = vld [vmem:[%s3 + $0x10] sm:$0xff]
    %v953 = vld [vmem:[%s3 + $0x18] sm:$0xff]
    %v954 = vld [vmem:[%s3 + $0x20] sm:$0xff]
    %v955 = vld [vmem:[%s3 + $0x28] sm:$0xff]
    %v956 = vld [vmem:[%s3 + $0x30] sm:$0xff]
    %v957 = vld [vmem:[%s3 + $0x38] sm:$0xff]
    %v958 = vld [vmem:[%s3 + $0x40] sm:$0xff]
    %v959 = vld [vmem:[%s3 + $0x48] sm:$0xff]
    %v960 = vld [vmem:[%s3 + $0x50] sm:$0xff]
    %v961 = vld [vmem:[%s3 + $0x58] sm:$0xff]
    %v962 = vld [vmem:[%s3 + $0x60] sm:$0xff]
    %v963 = vld [vmem:[%s3 + $0x68] sm:$0xff]
    %v964 = vld [vmem:[%s3 + $0x70] sm:$0xff]
    %v965 = vld [vmem:[%s3 + $0x78] sm:$0xff]
    %v966 = vld [vmem:[%s3 + $0x80] sm:$0xff]
    %v967 = vld [vmem:[%s3 + $0x88] sm:$0xff]
    %v968 = vld [vmem:[%s3 + $0x90] sm:$0xff]
    %v969 = vld [vmem:[%s3 + $0x98] sm:$0xff]
    %v970 = vld [vmem:[%s3 + $0xa0] sm:$0xff]
    %v971 = vld [vmem:[%s3 + $0xa8] sm:$0xff]
    %v972 = vld [vmem:[%s3 + $0xb0] sm:$0xff]
    %v973 = vld [vmem:[%s3 + $0xb8] sm:$0xff]
    %v974 = vld [vmem:[%s3 + $0xc0] sm:$0xff]
    %v975 = vld [vmem:[%s3 + $0xc8] sm:$0xff]
    %v976 = vld [vmem:[%s3 + $0xd0] sm:$0xff]
    %v977 = vld [vmem:[%s3 + $0xd8] sm:$0xff]
    %v978 = vld [vmem:[%s3 + $0xe0] sm:$0xff]
    %v979 = vld [vmem:[%s3 + $0xe8] sm:$0xff]
    %v980 = vld [vmem:[%s3 + $0xf0] sm:$0xff]
    %v981 = vld [vmem:[%s3 + $0xf8] sm:$0xff]
    %v982 = vld [vmem:[%s3 + $0x100] sm:$0xff]
    %v983 = vld [vmem:[%s3 + $0x108] sm:$0xff]
    %v984 = vld [vmem:[%s3 + $0x110] sm:$0xff]
    %v985 = vld [vmem:[%s3 + $0x118] sm:$0xff]
    %v986 = vld [vmem:[%s3 + $0x120] sm:$0xff]
    %v987 = vld [vmem:[%s3 + $0x128] sm:$0xff]
    %v988 = vld [vmem:[%s3 + $0x130] sm:$0xff]
    %v989 = vld [vmem:[%s3 + $0x138] sm:$0xff]
    %v990 = vld [vmem:[%s3 + $0x140] sm:$0xff]
    %v991 = vld [vmem:[%s3 + $0x148] sm:$0xff]
    %v992 = vld [vmem:[%s3 + $0x150] sm:$0xff]
    %v993 = vld [vmem:[%s3 + $0x158] sm:$0xff]
    %v994 = vld [vmem:[%s3 + $0x160] sm:$0xff]
    %v995 = vld [vmem:[%s3 + $0x168] sm:$0xff]
    %v996 = vld [vmem:[%s3 + $0x170] sm:$0xff]
    %v997 = vld [vmem:[%s3 + $0x178] sm:$0xff]
    %v998 = vld [vmem:[%s3 + $0x180] sm:$0xff]
    %v999 = vld [vmem:[%s3 + $0x188] sm:$0xff]
    %v1000 = vld [vmem:[%s3 + $0x190] sm:$0xff]
    %v1001 = vld [vmem:[%s3 + $0x198] sm:$0xff]
    %v1002 = vld [vmem:[%s3 + $0x1a0] sm:$0xff]
    %v1003 = vld [vmem:[%s3 + $0x1a8] sm:$0xff]
    %v1004 = vld [vmem:[%s3 + $0x1b0] sm:$0xff]
    %v1005 = vld [vmem:[%s3 + $0x1b8] sm:$0xff]
    %v1006 = vld [vmem:[%s3 + $0x1c0] sm:$0xff]
    %v1007 = vld [vmem:[%s3 + $0x1c8] sm:$0xff]
    %v1008 = vld [vmem:[%s3 + $0x1d0] sm:$0xff]
    %v1009 = vld [vmem:[%s3 + $0x1d8] sm:$0xff]
    %v1010 = vld [vmem:[%s3 + $0x1e0] sm:$0xff]
    %v1011 = vld [vmem:[%s3 + $0x1e8] sm:$0xff]
    %v1012 = vld [vmem:[%s3 + $0x1f0] sm:$0xff]
    %v1013 = vld [vmem:[%s3 + $0x1f8] sm:$0xff]
    %v1014 = vld [vmem:[%s3 + $0x200] sm:$0xff]
    %v1015 = vld [vmem:[%s3 + $0x208] sm:$0xff]
    %v1016 = vld [vmem:[%s3 + $0x210] sm:$0xff]
    %v1017 = vld [vmem:[%s3 + $0x218] sm:$0xff]
    %v1018 = vld [vmem:[%s3 + $0x220] sm:$0xff]
    %v1019 = vld [vmem:[%s3 + $0x228] sm:$0xff]
    %v1020 = vld [vmem:[%s3 + $0x230] sm:$0xff]
    %v1021 = vld [vmem:[%s3 + $0x238] sm:$0xff]
    %v1022 = vld [vmem:[%s3 + $0x240] sm:$0xff]
    %v1023 = vld [vmem:[%s3 + $0x248] sm:$0xff]
    %v1024 = vld [vmem:[%s3 + $0x250] sm:$0xff]
    %v1025 = vld [vmem:[%s3 + $0x258] sm:$0xff]
    %v1026 = vld [vmem:[%s3 + $0x260] sm:$0xff]
    %v1027 = vld [vmem:[%s3 + $0x268] sm:$0xff]
    %v1028 = vld [vmem:[%s3 + $0x270] sm:$0xff]
    %v1029 = vld [vmem:[%s3 + $0x278] sm:$0xff]
    %v1030 = vld [vmem:[%s3 + $0x280] sm:$0xff]
    %v1031 = vld [vmem:[%s3 + $0x288] sm:$0xff]
    %v1032 = vld [vmem:[%s3 + $0x290] sm:$0xff]
    %v1033 = vld [vmem:[%s3 + $0x298] sm:$0xff]
    %v1034 = vld [vmem:[%s3 + $0x2a0] sm:$0xff]
    %v1035 = vld [vmem:[%s3 + $0x2a8] sm:$0xff]
    %v1036 = vld [vmem:[%s3 + $0x2b0] sm:$0xff]
    %v1037 = vld [vmem:[%s3 + $0x2b8] sm:$0xff]
    %v1038 = vld [vmem:[%s3 + $0x2c0] sm:$0xff]
    %v1039 = vld [vmem:[%s3 + $0x2c8] sm:$0xff]
    %v1040 = vld [vmem:[%s3 + $0x2d0] sm:$0xff]
    %v1041 = vld [vmem:[%s3 + $0x2d8] sm:$0xff]
    %v1042 = vld [vmem:[%s3 + $0x2e0] sm:$0xff]
    %v1043 = vld [vmem:[%s3 + $0x2e8] sm:$0xff]
    %v1044 = vld [vmem:[%s3 + $0x2f0] sm:$0xff]
    %v1045 = vld [vmem:[%s3 + $0x2f8] sm:$0xff]
    %v1046 = vld [vmem:[%s3 + $0x300] sm:$0xff]
    %v1047 = vld [vmem:[%s3 + $0x308] sm:$0xff]
    %v1048 = vld [vmem:[%s3 + $0x310] sm:$0xff]
    %v1049 = vld [vmem:[%s3 + $0x318] sm:$0xff]
    %v1050 = vld [vmem:[%s3 + $0x320] sm:$0xff]
    %v1051 = vld [vmem:[%s3 + $0x328] sm:$0xff]
    %v1052 = vld [vmem:[%s3 + $0x330] sm:$0xff]
    %v1053 = vld [vmem:[%s3 + $0x338] sm:$0xff]
    %v1054 = vld [vmem:[%s3 + $0x340] sm:$0xff]
    %v1055 = vld [vmem:[%s3 + $0x348] sm:$0xff]
    %v1056 = vld [vmem:[%s3 + $0x350] sm:$0xff]
    %v1057 = vld [vmem:[%s3 + $0x358] sm:$0xff]
    %v1058 = vld [vmem:[%s3 + $0x360] sm:$0xff]
    %v1059 = vld [vmem:[%s3 + $0x368] sm:$0xff]
    %v1060 = vld [vmem:[%s3 + $0x370] sm:$0xff]
    %v1061 = vld [vmem:[%s3 + $0x378] sm:$0xff]
    %v1062 = vld [vmem:[%s3 + $0x380] sm:$0xff]
    %v1063 = vld [vmem:[%s3 + $0x388] sm:$0xff]
    %v1064 = vld [vmem:[%s3 + $0x390] sm:$0xff]
    %v1065 = vld [vmem:[%s3 + $0x398] sm:$0xff]
    %v1066 = vld [vmem:[%s3 + $0x3a0] sm:$0xff]
    %v1067 = vld [vmem:[%s3 + $0x3a8] sm:$0xff]
    %v1068 = vld [vmem:[%s3 + $0x3b0] sm:$0xff]
    %v1069 = vld [vmem:[%s3 + $0x3b8] sm:$0xff]
    %v1070 = vld [vmem:[%s3 + $0x3c0] sm:$0xff]
    %v1071 = vld [vmem:[%s3 + $0x3c8] sm:$0xff]
    %v1072 = vld [vmem:[%s3 + $0x3d0] sm:$0xff]
    %v1073 = vld [vmem:[%s3 + $0x3d8] sm:$0xff]
    %v1074 = vld [vmem:[%s3 + $0x3e0] sm:$0xff]
    %v1075 = vld [vmem:[%s3 + $0x3e8] sm:$0xff]
    %v1076 = vld [vmem:[%s3 + $0x3f0] sm:$0xff]
    %v1077 = vld [vmem:[%s3 + $0x3f8] sm:$0xff]
    %v1078 = vld [vmem:[%s3 + $0x400] sm:$0xff]
    %v1079 = vld [vmem:[%s3 + $0x408] sm:$0xff]
    %v1080 = vld [vmem:[%s3 + $0x410] sm:$0xff]
    %v1081 = vld [vmem:[%s3 + $0x418] sm:$0xff]
    %v1082 = vld [vmem:[%s3 + $0x420] sm:$0xff]
    %v1083 = vld [vmem:[%s3 + $0x428] sm:$0xff]
    %v1084 = vld [vmem:[%s3 + $0x430] sm:$0xff]
    %v1085 = vld [vmem:[%s3 + $0x438] sm:$0xff]
    %v1086 = vld [vmem:[%s3 + $0x440] sm:$0xff]
    %v1087 = vld [vmem:[%s3 + $0x448] sm:$0xff]
    %v1088 = vld [vmem:[%s3 + $0x450] sm:$0xff]
    %v1089 = vld [vmem:[%s3 + $0x458] sm:$0xff]
    %v1090 = vld [vmem:[%s3 + $0x460] sm:$0xff]
    %v1091 = vld [vmem:[%s3 + $0x468] sm:$0xff]
    %v1092 = vld [vmem:[%s3 + $0x470] sm:$0xff]
    %v1093 = vld [vmem:[%s3 + $0x478] sm:$0xff]
    %v1094 = vld [vmem:[%s3 + $0x480] sm:$0xff]
    %v1095 = vld [vmem:[%s3 + $0x488] sm:$0xff]
    %v1096 = vld [vmem:[%s3 + $0x490] sm:$0xff]
    %v1097 = vld [vmem:[%s3 + $0x498] sm:$0xff]
    %v1098 = vld [vmem:[%s3 + $0x4a0] sm:$0xff]
    %v1099 = vld [vmem:[%s3 + $0x4a8] sm:$0xff]
    %v1100 = vld [vmem:[%s3 + $0x4b0] sm:$0xff]
    %v1101 = vld [vmem:[%s3 + $0x4b8] sm:$0xff]
    %v1102 = vld [vmem:[%s3 + $0x4c0] sm:$0xff]
    %v1103 = vld [vmem:[%s3 + $0x4c8] sm:$0xff]
    %v1104 = vld [vmem:[%s3 + $0x4d0] sm:$0xff]
    %v1105 = vld [vmem:[%s3 + $0x4d8] sm:$0xff]
    %v1106 = vld [vmem:[%s3 + $0x4e0] sm:$0xff]
    %v1107 = vld [vmem:[%s3 + $0x4e8] sm:$0xff]
    %v1108 = vld [vmem:[%s3 + $0x4f0] sm:$0xff]
    %v1109 = vld [vmem:[%s3 + $0x4f8] sm:$0xff]
    %v1110 = vld [vmem:[%s3 + $0x500] sm:$0xff]
    %v1111 = vld [vmem:[%s3 + $0x508] sm:$0xff]
    %v1112 = vld [vmem:[%s3 + $0x510] sm:$0xff]
    %v1113 = vld [vmem:[%s3 + $0x518] sm:$0xff]
    %v1114 = vld [vmem:[%s3 + $0x520] sm:$0xff]
    %v1115 = vld [vmem:[%s3 + $0x528] sm:$0xff]
    %v1116 = vld [vmem:[%s3 + $0x530] sm:$0xff]
    %v1117 = vld [vmem:[%s3 + $0x538] sm:$0xff]
    %v1118 = vld [vmem:[%s3 + $0x540] sm:$0xff]
    %v1119 = vld [vmem:[%s3 + $0x548] sm:$0xff]
    %v1120 = vld [vmem:[%s3 + $0x550] sm:$0xff]
    %v1121 = vld [vmem:[%s3 + $0x558] sm:$0xff]
    %v1122 = vld [vmem:[%s3 + $0x560] sm:$0xff]
    %v1123 = vld [vmem:[%s3 + $0x568] sm:$0xff]
    %v1124 = vld [vmem:[%s3 + $0x570] sm:$0xff]
    %v1125 = vld [vmem:[%s3 + $0x578] sm:$0xff]
    %v1126 = vld [vmem:[%s3 + $0x580] sm:$0xff]
    %v1127 = vld [vmem:[%s3 + $0x588] sm:$0xff]
    %v1128 = vld [vmem:[%s3 + $0x590] sm:$0xff]
    %v1129 = vld [vmem:[%s3 + $0x598] sm:$0xff]
    %v1130 = vld [vmem:[%s3 + $0x5a0] sm:$0xff]
    %v1131 = vld [vmem:[%s3 + $0x5a8] sm:$0xff]
    %v1132 = vld [vmem:[%s3 + $0x5b0] sm:$0xff]
    %v1133 = vld [vmem:[%s3 + $0x5b8] sm:$0xff]
    %v1134 = vld [vmem:[%s3 + $0x5c0] sm:$0xff]
    %v1135 = vld [vmem:[%s3 + $0x5c8] sm:$0xff]
    %v1136 = vld [vmem:[%s3 + $0x5d0] sm:$0xff]
    %v1137 = vld [vmem:[%s3 + $0x5d8] sm:$0xff]
    %v1138 = vld [vmem:[%s3 + $0x5e0] sm:$0xff]
    %v1139 = vld [vmem:[%s3 + $0x5e8] sm:$0xff]
    %v1140 = vld [vmem:[%s3 + $0x5f0] sm:$0xff]
    %v1141 = vld [vmem:[%s3 + $0x5f8] sm:$0xff]
    %v1142 = vld [vmem:[%s3 + $0x600] sm:$0xff]
    %v1143 = vld [vmem:[%s3 + $0x608] sm:$0xff]
    %v1144 = vld [vmem:[%s3 + $0x610] sm:$0xff]
    %v1145 = vld [vmem:[%s3 + $0x618] sm:$0xff]
    %v1146 = vld [vmem:[%s3 + $0x620] sm:$0xff]
    %v1147 = vld [vmem:[%s3 + $0x628] sm:$0xff]
    %v1148 = vld [vmem:[%s3 + $0x630] sm:$0xff]
    %v1149 = vld [vmem:[%s3 + $0x638] sm:$0xff]
    %v1150 = vld [vmem:[%s3 + $0x640] sm:$0xff]
    %v1151 = vld [vmem:[%s3 + $0x648] sm:$0xff]
    %v1152 = vld [vmem:[%s3 + $0x650] sm:$0xff]
    %v1153 = vld [vmem:[%s3 + $0x658] sm:$0xff]
    %v1154 = vld [vmem:[%s3 + $0x660] sm:$0xff]
    %v1155 = vld [vmem:[%s3 + $0x668] sm:$0xff]
    %v1156 = vld [vmem:[%s3 + $0x670] sm:$0xff]
    %v1157 = vld [vmem:[%s3 + $0x678] sm:$0xff]
    %v1158 = vld [vmem:[%s3 + $0x680] sm:$0xff]
    %v1159 = vld [vmem:[%s3 + $0x688] sm:$0xff]
    %v1160 = vld [vmem:[%s3 + $0x690] sm:$0xff]
    %v1161 = vld [vmem:[%s3 + $0x698] sm:$0xff]
    %v1162 = vld [vmem:[%s3 + $0x6a0] sm:$0xff]
    %v1163 = vld [vmem:[%s3 + $0x6a8] sm:$0xff]
    %v1164 = vld [vmem:[%s3 + $0x6b0] sm:$0xff]
    %v1165 = vld [vmem:[%s3 + $0x6b8] sm:$0xff]
    %v1166 = vld [vmem:[%s4] sm:$0x3]
    %v1168 = vlaneseq
    %v1169 = vshrl.u32 %v1168, 7
    %v1170 = vsub.s32 0, %v1169
    %v1171 = vrot.slane %v1166, %v1170
    %v1172 = vlaneseq
    %v1173 = vshrl.u32 %v1172, 7
    %v1174 = vsub.s32 1, %v1173
    %v1175 = vrot.slane %v1166, %v1174
    %v1180 = vcombine.high %v948, %v948
    %v1182 = vunpack.c.l.s4 1983009808
    %v1183 = vunpack.c.0.s8 %v1182
    %v1184 = vlaneseq
    %v1185 = vshrl.u32 %v1184, 7
    %v1186 = vsub.s32 %v1183, %v1185
    %v1187 = vrot.slane %v948, %v1186
    %v1189 = vunpack.c.l.s4 1983009808
    %v1190 = vunpack.c.0.s8 %v1189
    %v1191 = vlaneseq
    %v1192 = vshrl.u32 %v1191, 7
    %v1193 = vsub.s32 %v1190, %v1192
    %v1194 = vrot.slane %v1180, %v1193
    %v1195 = vcombine.high %v1187, %v1187
    %v1196 = vcombine.high %v1194, %v1194
    %v1197 = vcombine.high %v949, %v949
    %v1199 = vunpack.c.l.s4 1983009808
    %v1200 = vunpack.c.0.s8 %v1199
    %v1201 = vlaneseq
    %v1202 = vshrl.u32 %v1201, 7
    %v1203 = vsub.s32 %v1200, %v1202
    %v1204 = vrot.slane %v949, %v1203
    %v1206 = vunpack.c.l.s4 1983009808
    %v1207 = vunpack.c.0.s8 %v1206
    %v1208 = vlaneseq
    %v1209 = vshrl.u32 %v1208, 7
    %v1210 = vsub.s32 %v1207, %v1209
    %v1211 = vrot.slane %v1197, %v1210
    %v1212 = vcombine.high %v1204, %v1204
    %vm1219 = vcmask 785408
    %v1220 = vsel %vm1219, %v1211, 0
    %1222 = vmatprep.subr.mxu0 %v951
    %1223 = vmatpush1.msra.mxu0 %v950
    %1224 = vmatprep.subr.mxu0 %v953
    %1225 = vmatpush1.msra.mxu0 %v952
    %1226 = vmatprep.subr.mxu0 %v955
    %1227 = vmatpush1.msra.mxu0 %v954
    %1228 = vmatprep.subr.mxu0 %v957
    %1229 = vmatpush1.msra.mxu0 %v956
    %1230 = vmatprep.subr.mxu0 %v959
    %1231 = vmatpush1.msra.mxu0 %v958
    %1232 = vmatprep.subr.mxu0 %v961
    %1233 = vmatpush1.msra.mxu0 %v960
    %1234 = vmatprep.subr.mxu0 %v963
    %1235 = vmatpush1.msra.mxu0 %v962
    %1236 = vmatprep.subr.mxu0 %v965
    %1237 = vmatpush1.msra.mxu0 %v964
    %1238 = vmatprep.subr.mxu0 %v967
    %1239 = vmatpush1.msra.mxu0 %v966
    %1240 = vmatprep.subr.mxu0 %v969
    %1241 = vmatpush1.msra.mxu0 %v968
    %1242 = vmatprep.subr.mxu0 %v971
    %1243 = vmatpush1.msra.mxu0 %v970
    %1244 = vmatprep.subr.mxu0 %v973
    %1245 = vmatpush1.msra.mxu0 %v972
    %1246 = vmatprep.subr.mxu0 %v975
    %1247 = vmatpush1.msra.mxu0 %v974
    %1248 = vmatprep.subr.mxu0 %v977
    %1249 = vmatpush1.msra.mxu0 %v976
    %1250 = vmatprep.subr.mxu0 %v979
    %1251 = vmatpush1.msra.mxu0 %v978
    %1252 = vmatprep.subr.mxu0 %v981
    %1253 = vmatpush1.msra.mxu0 %v980
    %1254 = vmatprep.subr.mxu0 %v983
    %1255 = vmatpush1.msra.mxu0 %v982
    %1256 = vmatprep.subr.mxu0 %v985
    %1257 = vmatpush1.msra.mxu0 %v984
    %1258 = vmatprep.subr.mxu0 %v987
    %1259 = vmatpush1.msra.mxu0 %v986
    %1260 = vmatprep.subr.mxu0 %v989
    %1261 = vmatpush1.msra.mxu0 %v988
    %1262 = vmatprep.subr.mxu0 %v991
    %1263 = vmatpush1.msra.mxu0 %v990
    %1264 = vmatprep.subr.mxu0 %v993
    %1265 = vmatpush1.msra.mxu0 %v992
    %1266 = vmatprep.subr.mxu0 %v995
    %1267 = vmatpush1.msra.mxu0 %v994
    %1268 = vmatprep.subr.mxu0 %v997
    %1269 = vmatpush1.msra.mxu0 %v996
    %1270 = vmatprep.subr.mxu0 %v999
    %1271 = vmatpush1.msra.mxu0 %v998
    %1272 = vmatprep.subr.mxu0 %v1001
    %1273 = vmatpush1.msra.mxu0 %v1000
    %1274 = vmatprep.subr.mxu0 %v1003
    %1275 = vmatpush1.msra.mxu0 %v1002
    %1276 = vmatprep.subr.mxu0 %v1005
    %1277 = vmatpush1.msra.mxu0 %v1004
    %1278 = vmatprep.subr.mxu0 %v1007
    %1279 = vmatpush1.msra.mxu0 %v1006
    %1280 = vmatprep.subr.mxu0 %v1009
    %1281 = vmatpush1.msra.mxu0 %v1008
    %1282 = vmatprep.subr.mxu0 %v1011
    %1283 = vmatpush1.msra.mxu0 %v1010
    %1284 = vmatprep.subr.mxu0 %v1013
    %1285 = vmatpush1.msra.mxu0 %v1012
    %1286 = vmatprep.mubr.f32.mxu0 %v1195
    %1287 = vmatmul.mubr.f32.gmra.mrb[0].mxu0 %v1187
    %v1288 = vpop.f32.mrb[0].mxu0
    %v1289 = vadd.f32 %v1171, %v1288
    %v1290 = vpop.f32.mrb[0].mxu0
    %v1291 = vadd.f32 %v1175, %v1290
    %1292 = vdwg.mxu0
    %1293 = vmatprep.subr.mxu0 %v1015
    %1294 = vmatpush1.msra.mxu0 %v1014
    %1295 = vmatprep.subr.mxu0 %v1017
    %1296 = vmatpush1.msra.mxu0 %v1016
    %1297 = vmatprep.subr.mxu0 %v1019
    %1298 = vmatpush1.msra.mxu0 %v1018
    %1299 = vmatprep.subr.mxu0 %v1021
    %1300 = vmatpush1.msra.mxu0 %v1020
    %1301 = vmatprep.subr.mxu0 %v1023
    %1302 = vmatpush1.msra.mxu0 %v1022
    %1303 = vmatprep.subr.mxu0 %v1025
    %1304 = vmatpush1.msra.mxu0 %v1024
    %1305 = vmatprep.subr.mxu0 %v1027
    %1306 = vmatpush1.msra.mxu0 %v1026
    %1307 = vmatprep.subr.mxu0 %v1029
    %1308 = vmatpush1.msra.mxu0 %v1028
    %1309 = vmatprep.subr.mxu0 %v1031
    %1310 = vmatpush1.msra.mxu0 %v1030
    %1311 = vmatprep.subr.mxu0 %v1033
    %1312 = vmatpush1.msra.mxu0 %v1032
    %1313 = vmatprep.subr.mxu0 %v1035
    %1314 = vmatpush1.msra.mxu0 %v1034
    %1315 = vmatprep.subr.mxu0 %v1037
    %1316 = vmatpush1.msra.mxu0 %v1036
    %1317 = vmatprep.subr.mxu0 %v1039
    %1318 = vmatpush1.msra.mxu0 %v1038
    %1319 = vmatprep.subr.mxu0 %v1041
    %1320 = vmatpush1.msra.mxu0 %v1040
    %1321 = vmatprep.subr.mxu0 %v1043
    %1322 = vmatpush1.msra.mxu0 %v1042
    %1323 = vmatprep.subr.mxu0 %v1045
    %1324 = vmatpush1.msra.mxu0 %v1044
    %1325 = vmatprep.subr.mxu0 %v1047
    %1326 = vmatpush1.msra.mxu0 %v1046
    %1327 = vmatprep.subr.mxu0 %v1049
    %1328 = vmatpush1.msra.mxu0 %v1048
    %1329 = vmatprep.subr.mxu0 %v1051
    %1330 = vmatpush1.msra.mxu0 %v1050
    %1331 = vmatprep.subr.mxu0 %v1053
    %1332 = vmatpush1.msra.mxu0 %v1052
    %1333 = vmatprep.subr.mxu0 %v1055
    %1334 = vmatpush1.msra.mxu0 %v1054
    %1335 = vmatprep.subr.mxu0 %v1057
    %1336 = vmatpush1.msra.mxu0 %v1056
    %1337 = vmatprep.subr.mxu0 %v1059
    %1338 = vmatpush1.msra.mxu0 %v1058
    %1339 = vmatprep.subr.mxu0 %v1061
    %1340 = vmatpush1.msra.mxu0 %v1060
    %1341 = vmatprep.subr.mxu0 %v1063
    %1342 = vmatpush1.msra.mxu0 %v1062
    %1343 = vmatprep.subr.mxu0 %v1065
    %1344 = vmatpush1.msra.mxu0 %v1064
    %1345 = vmatprep.subr.mxu0 %v1067
    %1346 = vmatpush1.msra.mxu0 %v1066
    %1347 = vmatprep.subr.mxu0 %v1069
    %1348 = vmatpush1.msra.mxu0 %v1068
    %1349 = vmatprep.subr.mxu0 %v1071
    %1350 = vmatpush1.msra.mxu0 %v1070
    %1351 = vmatprep.subr.mxu0 %v1073
    %1352 = vmatpush1.msra.mxu0 %v1072
    %1353 = vmatprep.subr.mxu0 %v1075
    %1354 = vmatpush1.msra.mxu0 %v1074
    %1355 = vmatprep.subr.mxu0 %v1077
    %1356 = vmatpush1.msra.mxu0 %v1076
    %1357 = vmatprep.mubr.f32.mxu0 %v1196
    %1358 = vmatmul.mubr.f32.gmra.mrb[0].mxu0 %v1194
    %v1359 = vpop.f32.mrb[0].mxu0
    %v1360 = vadd.f32 %v1289, %v1359
    %v1361 = vpop.f32.mrb[0].mxu0
    %v1362 = vadd.f32 %v1291, %v1361
    %1363 = vdwg.mxu0
    %1364 = vmatprep.subr.mxu0 %v1079
    %1365 = vmatpush1.msra.mxu0 %v1078
    %1366 = vmatprep.subr.mxu0 %v1081
    %1367 = vmatpush1.msra.mxu0 %v1080
    %1368 = vmatprep.subr.mxu0 %v1083
    %1369 = vmatpush1.msra.mxu0 %v1082
    %1370 = vmatprep.subr.mxu0 %v1085
    %1371 = vmatpush1.msra.mxu0 %v1084
    %1372 = vmatprep.subr.mxu0 %v1087
    %1373 = vmatpush1.msra.mxu0 %v1086
    %1374 = vmatprep.subr.mxu0 %v1089
    %1375 = vmatpush1.msra.mxu0 %v1088
    %1376 = vmatprep.subr.mxu0 %v1091
    %1377 = vmatpush1.msra.mxu0 %v1090
    %1378 = vmatprep.subr.mxu0 %v1093
    %1379 = vmatpush1.msra.mxu0 %v1092
    %1380 = vmatprep.subr.mxu0 %v1095
    %1381 = vmatpush1.msra.mxu0 %v1094
    %1382 = vmatprep.subr.mxu0 %v1097
    %1383 = vmatpush1.msra.mxu0 %v1096
    %1384 = vmatprep.subr.mxu0 %v1099
    %1385 = vmatpush1.msra.mxu0 %v1098
    %1386 = vmatprep.subr.mxu0 %v1101
    %1387 = vmatpush1.msra.mxu0 %v1100
    %1388 = vmatprep.subr.mxu0 %v1103
    %1389 = vmatpush1.msra.mxu0 %v1102
    %1390 = vmatprep.subr.mxu0 %v1105
    %1391 = vmatpush1.msra.mxu0 %v1104
    %1392 = vmatprep.subr.mxu0 %v1107
    %1393 = vmatpush1.msra.mxu0 %v1106
    %1394 = vmatprep.subr.mxu0 %v1109
    %1395 = vmatpush1.msra.mxu0 %v1108
    %1396 = vmatprep.subr.mxu0 %v1111
    %1397 = vmatpush1.msra.mxu0 %v1110
    %1398 = vmatprep.subr.mxu0 %v1113
    %1399 = vmatpush1.msra.mxu0 %v1112
    %1400 = vmatprep.subr.mxu0 %v1115
    %1401 = vmatpush1.msra.mxu0 %v1114
    %1402 = vmatprep.subr.mxu0 %v1117
    %1403 = vmatpush1.msra.mxu0 %v1116
    %1404 = vmatprep.subr.mxu0 %v1119
    %1405 = vmatpush1.msra.mxu0 %v1118
    %1406 = vmatprep.subr.mxu0 %v1121
    %1407 = vmatpush1.msra.mxu0 %v1120
    %1408 = vmatprep.subr.mxu0 %v1123
    %1409 = vmatpush1.msra.mxu0 %v1122
    %1410 = vmatprep.subr.mxu0 %v1125
    %1411 = vmatpush1.msra.mxu0 %v1124
    %1412 = vmatprep.subr.mxu0 %v1127
    %1413 = vmatpush1.msra.mxu0 %v1126
    %1414 = vmatprep.subr.mxu0 %v1129
    %1415 = vmatpush1.msra.mxu0 %v1128
    %1416 = vmatprep.subr.mxu0 %v1131
    %1417 = vmatpush1.msra.mxu0 %v1130
    %1418 = vmatprep.subr.mxu0 %v1133
    %1419 = vmatpush1.msra.mxu0 %v1132
    %1420 = vmatprep.subr.mxu0 %v1135
    %1421 = vmatpush1.msra.mxu0 %v1134
    %1422 = vmatprep.subr.mxu0 %v1137
    %1423 = vmatpush1.msra.mxu0 %v1136
    %1424 = vmatprep.subr.mxu0 %v1139
    %1425 = vmatpush1.msra.mxu0 %v1138
    %1426 = vmatprep.subr.mxu0 %v1141
    %1427 = vmatpush1.msra.mxu0 %v1140
    %1428 = vmatprep.mubr.f32.mxu0 %v1212
    %1429 = vmatmul.mubr.f32.gmra.mrb[0].mxu0 %v1204
    %v1430 = vpop.f32.mrb[0].mxu0
    %v1431 = vadd.f32 %v1360, %v1430
    %v1432 = vpop.f32.mrb[0].mxu0
    %v1433 = vadd.f32 %v1362, %v1432
    %1434 = vdwg.mxu0
    %1435 = vmatprep.subr.mxu0 %v1143
    %1436 = vmatpush1.msra.mxu0 %v1142
    %1437 = vmatprep.subr.mxu0 %v1145
    %1438 = vmatpush1.msra.mxu0 %v1144
    %1439 = vmatprep.subr.mxu0 %v1147
    %1440 = vmatpush1.msra.mxu0 %v1146
    %1441 = vmatprep.subr.mxu0 %v1149
    %1442 = vmatpush1.msra.mxu0 %v1148
    %1443 = vmatprep.subr.mxu0 %v1151
    %1444 = vmatpush1.msra.mxu0 %v1150
    %1445 = vmatprep.subr.mxu0 %v1153
    %1446 = vmatpush1.msra.mxu0 %v1152
    %1447 = vmatprep.subr.mxu0 %v1155
    %1448 = vmatpush1.msra.mxu0 %v1154
    %1449 = vmatprep.subr.mxu0 %v1157
    %1450 = vmatpush1.msra.mxu0 %v1156
    %1451 = vmatprep.subr.mxu0 %v1159
    %1452 = vmatpush1.msra.mxu0 %v1158
    %1453 = vmatprep.subr.mxu0 %v1161
    %1454 = vmatpush1.msra.mxu0 %v1160
    %1455 = vmatprep.subr.mxu0 %v1163
    %1456 = vmatpush1.msra.mxu0 %v1162
    %1457 = vmatprep.subr.mxu0 %v1165
    %1458 = vmatpush1.msra.mxu0 %v1164
    %1459 = vmatprep.subr.mxu0 0.0
    %1460 = vmatpush1.msra.mxu0 0.0
    %1461 = vmatprep.subr.mxu0 0.0
    %1462 = vmatpush1.msra.mxu0 0.0
    %1463 = vmatprep.subr.mxu0 0.0
    %1464 = vmatpush1.msra.mxu0 0.0
    %1465 = vmatprep.subr.mxu0 0.0
    %1466 = vmatpush1.msra.mxu0 0.0
    %1467 = vmatprep.subr.mxu0 0.0
    %1468 = vmatpush1.msra.mxu0 0.0
    %1469 = vmatprep.subr.mxu0 0.0
    %1470 = vmatpush1.msra.mxu0 0.0
    %1471 = vmatprep.subr.mxu0 0.0
    %1472 = vmatpush1.msra.mxu0 0.0
    %1473 = vmatprep.subr.mxu0 0.0
    %1474 = vmatpush1.msra.mxu0 0.0
    %1475 = vmatprep.subr.mxu0 0.0
    %1476 = vmatpush1.msra.mxu0 0.0
    %1477 = vmatprep.subr.mxu0 0.0
    %1478 = vmatpush1.msra.mxu0 0.0
    %1479 = vmatprep.subr.mxu0 0.0
    %1480 = vmatpush1.msra.mxu0 0.0
    %1481 = vmatprep.subr.mxu0 0.0
    %1482 = vmatpush1.msra.mxu0 0.0
    %1483 = vmatprep.subr.mxu0 0.0
    %1484 = vmatpush1.msra.mxu0 0.0
    %1485 = vmatprep.subr.mxu0 0.0
    %1486 = vmatpush1.msra.mxu0 0.0
    %1487 = vmatprep.subr.mxu0 0.0
    %1488 = vmatpush1.msra.mxu0 0.0
    %1489 = vmatprep.subr.mxu0 0.0
    %1490 = vmatpush1.msra.mxu0 0.0
    %1491 = vmatprep.subr.mxu0 0.0
    %1492 = vmatpush1.msra.mxu0 0.0
    %1493 = vmatprep.subr.mxu0 0.0
    %1494 = vmatpush1.msra.mxu0 0.0
    %1495 = vmatprep.subr.mxu0 0.0
    %1496 = vmatpush1.msra.mxu0 0.0
    %1497 = vmatprep.subr.mxu0 0.0
    %1498 = vmatpush1.msra.mxu0 0.0
    %1499 = vmatprep.mubr.f32.mxu0 0.0
    %1500 = vmatmul.mubr.f32.gmra.mrb[0].mxu0 %v1220
    %v1501 = vpop.f32.mrb[0].mxu0
    %v1502 = vadd.f32 %v1431, %v1501
    %v1503 = vpop.f32.mrb[0].mxu0
    %v1504 = vadd.f32 %v1433, %v1503
    %1505 = vdwg.mxu0
    %v1506 = vmax.f32 %v1502, 0.0
    %v1507 = vmax.f32 %v1504, 0.0
    %v1508 = vld [vmem:[%s5] sm:$0xff]
    %v1509 = vld [vmem:[%s5 + $0x8] sm:$0xff]
    %v1510 = vld [vmem:[%s5 + $0x10] sm:$0xff]
    %v1511 = vld [vmem:[%s5 + $0x18] sm:$0xff]
    %v1512 = vld [vmem:[%s5 + $0x20] sm:$0xff]
    %v1513 = vld [vmem:[%s5 + $0x28] sm:$0xff]
    %v1514 = vld [vmem:[%s5 + $0x30] sm:$0xff]
    %v1515 = vld [vmem:[%s5 + $0x38] sm:$0xff]
    %v1516 = vld [vmem:[%s5 + $0x40] sm:$0xff]
    %v1517 = vld [vmem:[%s5 + $0x48] sm:$0xff]
    %v1518 = vld [vmem:[%s5 + $0x50] sm:$0xff]
    %v1519 = vld [vmem:[%s5 + $0x58] sm:$0xff]
    %v1520 = vld [vmem:[%s5 + $0x60] sm:$0xff]
    %v1521 = vld [vmem:[%s5 + $0x68] sm:$0xff]
    %v1522 = vld [vmem:[%s5 + $0x70] sm:$0xff]
    %v1523 = vld [vmem:[%s5 + $0x78] sm:$0xff]
    %v1524 = vld [vmem:[%s5 + $0x80] sm:$0xff]
    %v1525 = vld [vmem:[%s5 + $0x88] sm:$0xff]
    %v1526 = vld [vmem:[%s5 + $0x90] sm:$0xff]
    %v1527 = vld [vmem:[%s5 + $0x98] sm:$0xff]
    %v1528 = vld [vmem:[%s5 + $0xa0] sm:$0xff]
    %v1529 = vld [vmem:[%s5 + $0xa8] sm:$0xff]
    %v1530 = vld [vmem:[%s5 + $0xb0] sm:$0xff]
    %v1531 = vld [vmem:[%s5 + $0xb8] sm:$0xff]
    %v1532 = vld [vmem:[%s5 + $0xc0] sm:$0xff]
    %v1533 = vld [vmem:[%s5 + $0xc8] sm:$0xff]
    %v1534 = vld [vmem:[%s5 + $0xd0] sm:$0xff]
    %v1535 = vld [vmem:[%s5 + $0xd8] sm:$0xff]
    %v1536 = vld [vmem:[%s5 + $0xe0] sm:$0xff]
    %v1537 = vld [vmem:[%s5 + $0xe8] sm:$0xff]
    %v1538 = vld [vmem:[%s5 + $0xf0] sm:$0xff]
    %v1539 = vld [vmem:[%s5 + $0xf8] sm:$0xff]
    %v1540 = vld [vmem:[%s6] sm:$0x1]
    %v1542 = vlaneseq
    %v1543 = vshrl.u32 %v1542, 7
    %v1544 = vsub.s32 0, %v1543
    %v1545 = vrot.slane %v1540, %v1544
    %1547 = vmatprep.subr.mxu0 0.0
    %1548 = vmatpush1.msra.mxu0 %v1508
    %1549 = vmatprep.subr.mxu0 0.0
    %1550 = vmatpush1.msra.mxu0 %v1509
    %1551 = vmatprep.subr.mxu0 0.0
    %1552 = vmatpush1.msra.mxu0 %v1510
    %1553 = vmatprep.subr.mxu0 0.0
    %1554 = vmatpush1.msra.mxu0 %v1511
    %1555 = vmatprep.subr.mxu0 0.0
    %1556 = vmatpush1.msra.mxu0 %v1512
    %1557 = vmatprep.subr.mxu0 0.0
    %1558 = vmatpush1.msra.mxu0 %v1513
    %1559 = vmatprep.subr.mxu0 0.0
    %1560 = vmatpush1.msra.mxu0 %v1514
    %1561 = vmatprep.subr.mxu0 0.0
    %1562 = vmatpush1.msra.mxu0 %v1515
    %1563 = vmatprep.subr.mxu0 0.0
    %1564 = vmatpush1.msra.mxu0 %v1516
    %1565 = vmatprep.subr.mxu0 0.0
    %1566 = vmatpush1.msra.mxu0 %v1517
    %1567 = vmatprep.subr.mxu0 0.0
    %1568 = vmatpush1.msra.mxu0 %v1518
    %1569 = vmatprep.subr.mxu0 0.0
    %1570 = vmatpush1.msra.mxu0 %v1519
    %1571 = vmatprep.subr.mxu0 0.0
    %1572 = vmatpush1.msra.mxu0 %v1520
    %1573 = vmatprep.subr.mxu0 0.0
    %1574 = vmatpush1.msra.mxu0 %v1521
    %1575 = vmatprep.subr.mxu0 0.0
    %1576 = vmatpush1.msra.mxu0 %v1522
    %1577 = vmatprep.subr.mxu0 0.0
    %1578 = vmatpush1.msra.mxu0 %v1523
    %1579 = vmatprep.subr.mxu0 0.0
    %1580 = vmatpush1.msra.mxu0 %v1524
    %1581 = vmatprep.subr.mxu0 0.0
    %1582 = vmatpush1.msra.mxu0 %v1525
    %1583 = vmatprep.subr.mxu0 0.0
    %1584 = vmatpush1.msra.mxu0 %v1526
    %1585 = vmatprep.subr.mxu0 0.0
    %1586 = vmatpush1.msra.mxu0 %v1527
    %1587 = vmatprep.subr.mxu0 0.0
    %1588 = vmatpush1.msra.mxu0 %v1528
    %1589 = vmatprep.subr.mxu0 0.0
    %1590 = vmatpush1.msra.mxu0 %v1529
    %1591 = vmatprep.subr.mxu0 0.0
    %1592 = vmatpush1.msra.mxu0 %v1530
    %1593 = vmatprep.subr.mxu0 0.0
    %1594 = vmatpush1.msra.mxu0 %v1531
    %1595 = vmatprep.subr.mxu0 0.0
    %1596 = vmatpush1.msra.mxu0 %v1532
    %1597 = vmatprep.subr.mxu0 0.0
    %1598 = vmatpush1.msra.mxu0 %v1533
    %1599 = vmatprep.subr.mxu0 0.0
    %1600 = vmatpush1.msra.mxu0 %v1534
    %1601 = vmatprep.subr.mxu0 0.0
    %1602 = vmatpush1.msra.mxu0 %v1535
    %1603 = vmatprep.subr.mxu0 0.0
    %1604 = vmatpush1.msra.mxu0 %v1536
    %1605 = vmatprep.subr.mxu0 0.0
    %1606 = vmatpush1.msra.mxu0 %v1537
    %1607 = vmatprep.subr.mxu0 0.0
    %1608 = vmatpush1.msra.mxu0 %v1538
    %1609 = vmatprep.subr.mxu0 0.0
    %1610 = vmatpush1.msra.mxu0 %v1539
    %1611 = vmatprep.mubr.f32.mxu0 %v1507
    %1612 = vmatmul.mubr.f32.gmra.mrb[0].mxu0 %v1506
    %v1613 = vpop.f32.mrb[0].mxu0
    %v1614 = vadd.f32 %v1545, %v1613
    %v1615 = vpop.f32.mrb[0].mxu0
    %1616 = vdwg.mxu0
    %v1617 = vxor.u32 %v1614, 2147483648
    %v1618 = vmul.f32 %v1617, 1.442695
    %v1619 = vpow.pop %v1618
    %v1620 = vadd.f32 %v1619, 1.0
    %v1621 = vrcp.pop %v1620
    %v1622 = vmul.f32 1.0, %v1621
    %vm1623 = vcmask 74752
    %1624 = vst.msk [vmem:[#allocation4] sm:$0x3] %vm1623, %v1622
    // Predicated region
    $region30: #{netz_forward.1} parent=1 // pred_check
      _
    $region31: #{netz_forward.1} parent=1 // pred_check_branch
      %1626 = sbr.rel (0) target = $region33
    $region32: #{netz_forward.1} parent=1 // pred_region
      %s1628 = ssub.s32 32, 32
      %1629 = vsyncadd [#allocation5], %s1628
      %s1631 = sshll.u32 [#allocation4], 4
      %s1632 = int_to_ptr.vmem [resolvable:$true] %s1631
      %1634 = dma.vmem_to_hbm [thread:$0]  %s1632, 32, %s7, [#allocation5]
    $region33: #{netz_forward.1} parent=1 // pred_fallthru
      _
    // Predicated region
    $region34: #{netz_forward.1} parent=1 // pred_check
      _
    $region35: #{netz_forward.1} parent=1 // pred_check_branch
      %1636 = sbr.rel (0) target = $region37
    $region36: #{netz_forward.1} parent=1 // pred_region
      %1637 = dma.done [#allocation5], 32
    $region37: #{netz_forward.1} parent=1 // pred_fallthru
      _
    %1638 = vsyncpa [#allocation5], 1

</llo_original>
